<compile_context>
chip_gen: v7x
topology: tpu7x:2x2x1
jax: 0.10.0
libtpu: 0.0.40
codegen_flags: <defaults>
</compile_context>

<pallas_src>
import jax
import jax.numpy as jnp
from jax.experimental import pallas as pl
from jax.experimental.pallas import tpu as pltpu

LANES = 128


def _round_up(x, m):
    return ((x + m - 1) // m) * m


def _cdiv(a, b):
    return -(-a // b)


def _physical_vmem_bytes():
    """Per-TensorCore VMEM capacity; conservative fallback is v7x's 64 MiB."""
    try:
        return int(pltpu.get_tpu_info().vmem_capacity_bytes)
    except Exception:
        return 64 << 20


def mlp_kernel(x_ref, w1_ref, b1_ref, w2_ref, b2_ref, w3_ref, b3_ref,
               w4_ref, b4_ref, o_ref):
    # Layer 1: Linear(input_dim, 64) + ReLU   (Dropout = identity in eval mode)
    h = jnp.dot(x_ref[...], w1_ref[...], preferred_element_type=jnp.float32)
    h = jnp.maximum(h + b1_ref[...], 0.0)
    # Layer 2: Linear(64, 128) + ReLU
    h = jnp.dot(h.astype(w2_ref.dtype), w2_ref[...],
                preferred_element_type=jnp.float32)
    h = jnp.maximum(h + b2_ref[...], 0.0)
    # Layer 3: Linear(128, 64) + ReLU
    h = jnp.dot(h.astype(w3_ref.dtype), w3_ref[...],
                preferred_element_type=jnp.float32)
    h = jnp.maximum(h + b3_ref[...], 0.0)
    # Output layer: Linear(64, 10) — columns zero-padded to 128 (lane-dense store)
    out = jnp.dot(h.astype(w4_ref.dtype), w4_ref[...],
                  preferred_element_type=jnp.float32) + b4_ref[...]
    o_ref[...] = out.astype(o_ref.dtype)


def dnn_forward(x, params, *, tile_b=None, use_bf16=True):
    """Fused MLP forward. x: (B, D); params: w{i}: (in, out), b{i}: (1, out)."""
    B, D = x.shape
    w1, b1 = params["w1"], params["b1"]
    w2, b2 = params["w2"], params["b2"]
    w3, b3 = params["w3"], params["b3"]
    w4, b4 = params["w4"], params["b4"]
    n_out = w4.shape[1]

    # ---- lane-dense output: pad final layer to a multiple of 128 columns ----
    n_out_pad = _round_up(n_out, LANES)
    if n_out_pad != n_out:
        w4 = jnp.pad(w4, ((0, 0), (0, n_out_pad - n_out)))
        b4 = jnp.pad(b4, ((0, 0), (0, n_out_pad - n_out)))

    # ---- streaming dtype (bf16 default; accumulation stays f32 in-kernel) ----
    compute_dtype = jnp.bfloat16 if use_bf16 else jnp.float32
    sublane = 16 if use_bf16 else 8       # sublane packing of the streamed dtype
    itemsize = 2 if use_bf16 else 4
    x_c = x.astype(compute_dtype)
    w1, w2, w3, w4 = (w.astype(compute_dtype) for w in (w1, w2, w3, w4))
    b1, b2, b3, b4 = (b.astype(jnp.float32) for b in (b1, b2, b3, b4))

    weights = (w1, b1, w2, b2, w3, b3, w4, b4)
    param_bytes = sum(int(a.size) * a.dtype.itemsize for a in weights)

    # ---- batch tiling: big tiles, sublane-aligned, clamped to VMEM budget ----
    if tile_b is None:
        tile_b = 2048 if use_bf16 else 1024
    tile_b = max(sublane, _round_up(tile_b, sublane))
    tb = min(tile_b, _round_up(B, sublane))

    headroom = 8 << 20                      # Mosaic internal scratch + slack
    vmem_cap = int(0.85 * _physical_vmem_bytes())

    def _need_bytes(tb_):
        return (2 * tb_ * D * itemsize            # x tile, double-buffered
                + 2 * tb_ * n_out_pad * 4         # out tile, double-buffered
                + tb_ * (64 + 128 + 64 + n_out_pad) * 4   # f32 intermediates
                + 2 * param_bytes)                # params (worst case 2x)

    while tb > sublane and _need_bytes(tb) + headroom > vmem_cap:
        tb = max(sublane, _round_up(tb // 2, sublane))

    # ---- grid sizing: keep an even number of steps when possible (v7x cores) ----
    n_tiles = _cdiv(B, tb)
    if n_tiles == 1 and B > 2 * sublane:
        tb = max(sublane, _round_up(_cdiv(B, 2), sublane))
    elif n_tiles > 1 and n_tiles % 2 == 1:
        cand = max(sublane, _round_up(_cdiv(B, n_tiles + 1), sublane))
        if _cdiv(B, cand) % 2 == 0:
            tb = cand
    n_tiles = _cdiv(B, tb)
    B_pad = n_tiles * tb
    if B_pad != B:
        x_c = jnp.pad(x_c, ((0, B_pad - B), (0, 0)))

    # ---- VMEM limit: need-based, clamped to physical VMEM ----
    vmem_limit_bytes = int(max(min(_need_bytes(tb) + headroom, vmem_cap),
                               min(32 << 20, vmem_cap)))

    # ---- advisory cost estimate: bandwidth-heavy custom call ----
    flops = 2 * B_pad * (D * 64 + 64 * 128 + 128 * 64 + 64 * n_out_pad)
    bytes_accessed = (B_pad * D * itemsize + param_bytes + B_pad * n_out_pad * 4)
    cost = pl.CostEstimate(flops=flops, transcendentals=0,
                           bytes_accessed=bytes_accessed)

    def _const_spec(shape):
        zeros = (0,) * len(shape)
        # Grid-invariant operand: constant index_map, no per-step re-DMA.
        return pl.BlockSpec(shape, lambda i, _z=zeros: _z)

    grid_spec = pltpu.PrefetchScalarGridSpec(
        num_scalar_prefetch=0,
        grid=(n_tiles,),
        in_specs=[pl.BlockSpec((tb, D), lambda i: (i, 0))]
                 + [_const_spec(a.shape) for a in weights],
        out_specs=pl.BlockSpec((tb, n_out_pad), lambda i: (i, 0)),
    )
    out = pl.pallas_call(
        mlp_kernel,
        out_shape=jax.ShapeDtypeStruct((B_pad, n_out_pad), jnp.float32),
        grid_spec=grid_spec,
        compiler_params=pltpu.CompilerParams(
            dimension_semantics=("parallel",),
            vmem_limit_bytes=vmem_limit_bytes),
        cost_estimate=cost,
    )(x_c, *weights)

    return out[:B, :n_out]


def init_params(key, input_dim):
    """Deterministic init mimicking PyTorch nn.Linear default:
    U(-1/sqrt(fan_in), 1/sqrt(fan_in)) for both weights and biases."""
    dims = [(input_dim, 64), (64, 128), (128, 64), (64, 10)]
    params = {}
    for idx, (fan_in, fan_out) in enumerate(dims, start=1):
        key, kw, kb = jax.random.split(key, 3)
        bound = 1.0 / jnp.sqrt(float(fan_in))
        params[f"w{idx}"] = jax.random.uniform(
            kw, (fan_in, fan_out), jnp.float32, minval=-bound, maxval=bound)
        params[f"b{idx}"] = jax.random.uniform(
            kb, (1, fan_out), jnp.float32, minval=-bound, maxval=bound)
    return params


def reference_forward(x, params):
    h = jnp.maximum(x @ params["w1"] + params["b1"], 0.0)
    h = jnp.maximum(h @ params["w2"] + params["b2"], 0.0)
    h = jnp.maximum(h @ params["w3"] + params["b3"], 0.0)
    return h @ params["w4"] + params["b4"]


if __name__ == "__main__":
    key = jax.random.PRNGKey(0)
    k_x, k_p = jax.random.split(key)

    input_dim = 3072  # CIFAR-10 flattened: 3 * 32 * 32
    params = init_params(k_p, input_dim)

    # Two small smoke tests: one batch that fits a tile exactly, and one that
    # exercises the pad-to-tile-and-slice path (batch not a multiple of 8/16).
    for batch in (8, 10):
        kx = jax.random.fold_in(k_x, batch)
        x = jax.random.normal(kx, (batch, input_dim), jnp.float32)
        ref = reference_forward(x, params)

        # Exact-path check: f32 streaming, tight tolerance.
        out_f32 = jax.block_until_ready(dnn_forward(x, params, use_bf16=False))
        assert out_f32.shape == (batch, 10)
        assert jnp.allclose(out_f32, ref, atol=1e-4, rtol=1e-4), \
            "f32 path mismatch vs reference"

        # Default fast path: bf16 streaming with f32 accumulation (inference
        # numerics; looser tolerance for the 3072-wide bf16 reduction).
        out_bf16 = jax.block_until_ready(dnn_forward(x, params))
        assert out_bf16.shape == (batch, 10)
        assert jnp.allclose(out_bf16, ref, atol=5e-2, rtol=5e-2), \
            "bf16 path mismatch vs reference"

    print("KERNEL_OK")
</pallas_src>

<mosaic_0001>
module attributes {stable_mosaic.version = 11 : i64} {
  func.func @mlp_kernel(%arg0: i32, %arg1: memref<8x3072xf32, #tpu.memory_space<vmem>>, %arg2: memref<3072x64xf32, #tpu.memory_space<vmem>>, %arg3: memref<1x64xf32, #tpu.memory_space<vmem>>, %arg4: memref<64x128xf32, #tpu.memory_space<vmem>>, %arg5: memref<1x128xf32, #tpu.memory_space<vmem>>, %arg6: memref<128x64xf32, #tpu.memory_space<vmem>>, %arg7: memref<1x64xf32, #tpu.memory_space<vmem>>, %arg8: memref<64x128xf32, #tpu.memory_space<vmem>>, %arg9: memref<1x128xf32, #tpu.memory_space<vmem>>, %arg10: memref<8x128xf32, #tpu.memory_space<vmem>>) attributes {dimension_semantics = [#tpu.dimension_semantics<parallel>], iteration_bounds = array<i64: 1>, scalar_prefetch = 0 : i64, scratch_operands = 0 : i64, tpu.core_type = #tpu.core_type<tc>, window_params = [{transform_indices = @transform_0, window_bounds = array<i64: 8, 3072>}, {pipeline_mode = #tpu.pipeline_mode<synchronous>, transform_indices = @transform_1, window_bounds = array<i64: 3072, 64>}, {pipeline_mode = #tpu.pipeline_mode<synchronous>, transform_indices = @transform_2, window_bounds = array<i64: 1, 64>}, {pipeline_mode = #tpu.pipeline_mode<synchronous>, transform_indices = @transform_3, window_bounds = array<i64: 64, 128>}, {pipeline_mode = #tpu.pipeline_mode<synchronous>, transform_indices = @transform_4, window_bounds = array<i64: 1, 128>}, {pipeline_mode = #tpu.pipeline_mode<synchronous>, transform_indices = @transform_5, window_bounds = array<i64: 128, 64>}, {pipeline_mode = #tpu.pipeline_mode<synchronous>, transform_indices = @transform_6, window_bounds = array<i64: 1, 64>}, {pipeline_mode = #tpu.pipeline_mode<synchronous>, transform_indices = @transform_7, window_bounds = array<i64: 64, 128>}, {pipeline_mode = #tpu.pipeline_mode<synchronous>, transform_indices = @transform_8, window_bounds = array<i64: 1, 128>}, {transform_indices = @transform_9, window_bounds = array<i64: 8, 128>}]} {
    %c0 = arith.constant 0 : index
    %c0_0 = arith.constant 0 : index
    %0 = vector.load %arg1[%c0, %c0_0] : memref<8x3072xf32, #tpu.memory_space<vmem>>, vector<8x3072xf32>
    %c0_1 = arith.constant 0 : index
    %c0_2 = arith.constant 0 : index
    %1 = vector.load %arg2[%c0_1, %c0_2] : memref<3072x64xf32, #tpu.memory_space<vmem>>, vector<3072x64xf32>
    %cst = arith.constant dense<0.000000e+00> : vector<8x64xf32>
    %2 = tpu.matmul %0, %1, %cst {dimension_numbers = #tpu.dot_dimension_numbers<[1], [0], [0], [1], [0, 0, 1, 1], [], []>} : vector<8x3072xf32>, vector<3072x64xf32>, vector<8x64xf32> -> vector<8x64xf32>
    %c0_3 = arith.constant 0 : index
    %c0_4 = arith.constant 0 : index
    %3 = vector.load %arg3[%c0_3, %c0_4] : memref<1x64xf32, #tpu.memory_space<vmem>>, vector<1x64xf32>
    %4 = vector.broadcast %3 : vector<1x64xf32> to vector<8x64xf32>
    %5 = arith.addf %2, %4 : vector<8x64xf32>
    %cst_5 = arith.constant 0.000000e+00 : f32
    %6 = vector.broadcast %cst_5 : f32 to vector<8x64xf32>
    %7 = arith.maximumf %5, %6 : vector<8x64xf32>
    %c0_6 = arith.constant 0 : index
    %c0_7 = arith.constant 0 : index
    %8 = vector.load %arg4[%c0_6, %c0_7] : memref<64x128xf32, #tpu.memory_space<vmem>>, vector<64x128xf32>
    %cst_8 = arith.constant dense<0.000000e+00> : vector<8x128xf32>
    %9 = tpu.matmul %7, %8, %cst_8 {dimension_numbers = #tpu.dot_dimension_numbers<[1], [0], [0], [1], [0, 0, 1, 1], [], []>} : vector<8x64xf32>, vector<64x128xf32>, vector<8x128xf32> -> vector<8x128xf32>
    %c0_9 = arith.constant 0 : index
    %c0_10 = arith.constant 0 : index
    %10 = vector.load %arg5[%c0_9, %c0_10] : memref<1x128xf32, #tpu.memory_space<vmem>>, vector<1x128xf32>
    %11 = vector.broadcast %10 : vector<1x128xf32> to vector<8x128xf32>
    %12 = arith.addf %9, %11 : vector<8x128xf32>
    %cst_11 = arith.constant 0.000000e+00 : f32
    %13 = vector.broadcast %cst_11 : f32 to vector<8x128xf32>
    %14 = arith.maximumf %12, %13 : vector<8x128xf32>
    %c0_12 = arith.constant 0 : index
    %c0_13 = arith.constant 0 : index
    %15 = vector.load %arg6[%c0_12, %c0_13] : memref<128x64xf32, #tpu.memory_space<vmem>>, vector<128x64xf32>
    %cst_14 = arith.constant dense<0.000000e+00> : vector<8x64xf32>
    %16 = tpu.matmul %14, %15, %cst_14 {dimension_numbers = #tpu.dot_dimension_numbers<[1], [0], [0], [1], [0, 0, 1, 1], [], []>} : vector<8x128xf32>, vector<128x64xf32>, vector<8x64xf32> -> vector<8x64xf32>
    %c0_15 = arith.constant 0 : index
    %c0_16 = arith.constant 0 : index
    %17 = vector.load %arg7[%c0_15, %c0_16] : memref<1x64xf32, #tpu.memory_space<vmem>>, vector<1x64xf32>
    %18 = vector.broadcast %17 : vector<1x64xf32> to vector<8x64xf32>
    %19 = arith.addf %16, %18 : vector<8x64xf32>
    %cst_17 = arith.constant 0.000000e+00 : f32
    %20 = vector.broadcast %cst_17 : f32 to vector<8x64xf32>
    %21 = arith.maximumf %19, %20 : vector<8x64xf32>
    %c0_18 = arith.constant 0 : index
    %c0_19 = arith.constant 0 : index
    %22 = vector.load %arg8[%c0_18, %c0_19] : memref<64x128xf32, #tpu.memory_space<vmem>>, vector<64x128xf32>
    %cst_20 = arith.constant dense<0.000000e+00> : vector<8x128xf32>
    %23 = tpu.matmul %21, %22, %cst_20 {dimension_numbers = #tpu.dot_dimension_numbers<[1], [0], [0], [1], [0, 0, 1, 1], [], []>} : vector<8x64xf32>, vector<64x128xf32>, vector<8x128xf32> -> vector<8x128xf32>
    %c0_21 = arith.constant 0 : index
    %c0_22 = arith.constant 0 : index
    %24 = vector.load %arg9[%c0_21, %c0_22] : memref<1x128xf32, #tpu.memory_space<vmem>>, vector<1x128xf32>
    %25 = vector.broadcast %24 : vector<1x128xf32> to vector<8x128xf32>
    %26 = arith.addf %23, %25 : vector<8x128xf32>
    %c0_23 = arith.constant 0 : index
    %c0_24 = arith.constant 0 : index
    %27 = vector.load %arg10[%c0_23, %c0_24] : memref<8x128xf32, #tpu.memory_space<vmem>>, vector<8x128xf32>
    tpu.vector_store %arg10[%c0_23, %c0_24], %26 {strides = array<i32>} : memref<8x128xf32, #tpu.memory_space<vmem>>, vector<8x128xf32>,
    return
  }
  func.func @transform_0(%arg0: i32) -> (i32, i32) {
    %c0_i32 = arith.constant 0 : i32
    %c0_i32_0 = arith.constant 0 : i32
    return %arg0, %c0_i32 : i32, i32
  }
  func.func @transform_1(%arg0: i32) -> (i32, i32) {
    %c0_i32 = arith.constant 0 : i32
    %c0_i32_0 = arith.constant 0 : i32
    %c0_i32_1 = arith.constant 0 : i32
    return %c0_i32, %c0_i32_0 : i32, i32
  }
  func.func @transform_2(%arg0: i32) -> (i32, i32) {
    %c0_i32 = arith.constant 0 : i32
    %c0_i32_0 = arith.constant 0 : i32
    %c0_i32_1 = arith.constant 0 : i32
    return %c0_i32, %c0_i32_0 : i32, i32
  }
  func.func @transform_3(%arg0: i32) -> (i32, i32) {
    %c0_i32 = arith.constant 0 : i32
    %c0_i32_0 = arith.constant 0 : i32
    %c0_i32_1 = arith.constant 0 : i32
    return %c0_i32, %c0_i32_0 : i32, i32
  }
  func.func @transform_4(%arg0: i32) -> (i32, i32) {
    %c0_i32 = arith.constant 0 : i32
    %c0_i32_0 = arith.constant 0 : i32
    %c0_i32_1 = arith.constant 0 : i32
    return %c0_i32, %c0_i32_0 : i32, i32
  }
  func.func @transform_5(%arg0: i32) -> (i32, i32) {
    %c0_i32 = arith.constant 0 : i32
    %c0_i32_0 = arith.constant 0 : i32
    %c0_i32_1 = arith.constant 0 : i32
    return %c0_i32, %c0_i32_0 : i32, i32
  }
  func.func @transform_6(%arg0: i32) -> (i32, i32) {
    %c0_i32 = arith.constant 0 : i32
    %c0_i32_0 = arith.constant 0 : i32
    %c0_i32_1 = arith.constant 0 : i32
    return %c0_i32, %c0_i32_0 : i32, i32
  }
  func.func @transform_7(%arg0: i32) -> (i32, i32) {
    %c0_i32 = arith.constant 0 : i32
    %c0_i32_0 = arith.constant 0 : i32
    %c0_i32_1 = arith.constant 0 : i32
    return %c0_i32, %c0_i32_0 : i32, i32
  }
  func.func @transform_8(%arg0: i32) -> (i32, i32) {
    %c0_i32 = arith.constant 0 : i32
    %c0_i32_0 = arith.constant 0 : i32
    %c0_i32_1 = arith.constant 0 : i32
    return %c0_i32, %c0_i32_0 : i32, i32
  }
  func.func @transform_9(%arg0: i32) -> (i32, i32) {
    %c0_i32 = arith.constant 0 : i32
    %c0_i32_0 = arith.constant 0 : i32
    return %arg0, %c0_i32 : i32, i32
  }
}

</mosaic_0001>

<llo_original>
// kernel: tpu_custom_call.1
$region0: #{tpu_custom_call.1}
  #allocation0 [shape = 'u32[]', space=smem, size = 0x4, offset = 0x4, fixed_abs, tag = 'smem constant byte address 0x4 - core index']
  #allocation1 [shape = 'u32[144,128]{1,0:T(1,128)}', space=vmem, size = 0x12000, scoped, tag = 'internal scratch']
  %s0 = inlined_call_operand.vmem [shape: f32[8,3072], index: 0, kind: input, shape index: {}]
  %s1 = inlined_call_operand.vmem [shape: f32[3072,64], index: 1, kind: input, shape index: {}]
  %s2 = inlined_call_operand.vmem [shape: f32[1,64], index: 2, kind: input, shape index: {}]
  %s3 = inlined_call_operand.vmem [shape: f32[64,128], index: 3, kind: input, shape index: {}]
  %s4 = inlined_call_operand.vmem [shape: f32[1,128], index: 4, kind: input, shape index: {}]
  %s5 = inlined_call_operand.vmem [shape: f32[128,64], index: 5, kind: input, shape index: {}]
  %s6 = inlined_call_operand.vmem [shape: f32[1,64], index: 6, kind: input, shape index: {}]
  %s7 = inlined_call_operand.vmem [shape: f32[64,128], index: 7, kind: input, shape index: {}]
  %s8 = inlined_call_operand.vmem [shape: f32[1,128], index: 8, kind: input, shape index: {}]
  %s9 = inlined_call_operand.hbm [shape: f32[8,128], index: 9, kind: output, shape index: {}]
  %s10 = sld [smem:[#allocation0]]
  $region46: #{tpu_custom_call.1} parent=0
    _
  %s12 = ssub.s32 1, %s10
  %s13 = scalar_select 0, %s12, %s10
  $region1: #{tpu_custom_call.1} parent=0
    #allocation2 [shape = 'u8[4096]{0}', space=vmem, size = 0x1000, scoped, tag = 'output window, operand 0, single buffered']
    #allocation3 [shape = 's32[1]{0}', space=sflag, size = 0x4, scoped, tag = 'scoped memory for tpu_custom_call.1']
    %14 = vsyncpa [#allocation3], 0
    // Predicated region
    $region2: #{tpu_custom_call.1} parent=1 // pred_check
      _
    $region3: #{tpu_custom_call.1} parent=1 // pred_check_branch
      %16 = sbr.rel (0) target = $region5
    $region4: #{tpu_custom_call.1} parent=1 // pred_region
      _
    $region5: #{tpu_custom_call.1} parent=1 // pred_fallthru
      _
    // Predicated region
    $region6: #{tpu_custom_call.1} parent=1 // pred_check
      _
    $region7: #{tpu_custom_call.1} parent=1 // pred_check_branch
      %18 = sbr.rel (0) target = $region9
    $region8: #{tpu_custom_call.1} parent=1 // pred_region
      _
    $region9: #{tpu_custom_call.1} parent=1 // pred_fallthru
      _
    // Predicated region
    $region10: #{tpu_custom_call.1} parent=1 // pred_check
      _
    $region11: #{tpu_custom_call.1} parent=1 // pred_check_branch
      %20 = sbr.rel (0) target = $region13
    $region12: #{tpu_custom_call.1} parent=1 // pred_region
      _
    $region13: #{tpu_custom_call.1} parent=1 // pred_fallthru
      _
    // Predicated region
    $region14: #{tpu_custom_call.1} parent=1 // pred_check
      _
    $region15: #{tpu_custom_call.1} parent=1 // pred_check_branch
      %22 = sbr.rel (0) target = $region17
    $region16: #{tpu_custom_call.1} parent=1 // pred_region
      _
    $region17: #{tpu_custom_call.1} parent=1 // pred_fallthru
      _
    // Predicated region
    $region18: #{tpu_custom_call.1} parent=1 // pred_check
      _
    $region19: #{tpu_custom_call.1} parent=1 // pred_check_branch
      %24 = sbr.rel (0) target = $region21
    $region20: #{tpu_custom_call.1} parent=1 // pred_region
      _
    $region21: #{tpu_custom_call.1} parent=1 // pred_fallthru
      _
    // Predicated region
    $region22: #{tpu_custom_call.1} parent=1 // pred_check
      _
    $region23: #{tpu_custom_call.1} parent=1 // pred_check_branch
      %26 = sbr.rel (0) target = $region25
    $region24: #{tpu_custom_call.1} parent=1 // pred_region
      _
    $region25: #{tpu_custom_call.1} parent=1 // pred_fallthru
      _
    // Predicated region
    $region26: #{tpu_custom_call.1} parent=1 // pred_check
      _
    $region27: #{tpu_custom_call.1} parent=1 // pred_check_branch
      %28 = sbr.rel (0) target = $region29
    $region28: #{tpu_custom_call.1} parent=1 // pred_region
      _
    $region29: #{tpu_custom_call.1} parent=1 // pred_fallthru
      _
    // Predicated region
    $region30: #{tpu_custom_call.1} parent=1 // pred_check
      _
    $region31: #{tpu_custom_call.1} parent=1 // pred_check_branch
      %30 = sbr.rel (0) target = $region33
    $region32: #{tpu_custom_call.1} parent=1 // pred_region
      _
    $region33: #{tpu_custom_call.1} parent=1 // pred_fallthru
      _
    // Predicated region
    $region34: #{tpu_custom_call.1} parent=1 // pred_check
      _
    $region35: #{tpu_custom_call.1} parent=1 // pred_check_branch
      %32 = sbr.rel (0) target = $region37
    $region36: #{tpu_custom_call.1} parent=1 // pred_region
      _
    $region37: #{tpu_custom_call.1} parent=1 // pred_fallthru
      _
    %v33 = vld [vmem:[%s0] sm:$0xff]
    %v34 = vld [vmem:[%s0 + $0x8] sm:$0xff]
    %v35 = vld [vmem:[%s0 + $0x10] sm:$0xff]
    %v36 = vld [vmem:[%s0 + $0x18] sm:$0xff]
    %v37 = vld [vmem:[%s0 + $0x20] sm:$0xff]
    %v38 = vld [vmem:[%s0 + $0x28] sm:$0xff]
    %v39 = vld [vmem:[%s0 + $0x30] sm:$0xff]
    %v40 = vld [vmem:[%s0 + $0x38] sm:$0xff]
    %v41 = vld [vmem:[%s0 + $0x40] sm:$0xff]
    %v42 = vld [vmem:[%s0 + $0x48] sm:$0xff]
    %v43 = vld [vmem:[%s0 + $0x50] sm:$0xff]
    %v44 = vld [vmem:[%s0 + $0x58] sm:$0xff]
    %v45 = vld [vmem:[%s0 + $0x60] sm:$0xff]
    %v46 = vld [vmem:[%s0 + $0x68] sm:$0xff]
    %v47 = vld [vmem:[%s0 + $0x70] sm:$0xff]
    %v48 = vld [vmem:[%s0 + $0x78] sm:$0xff]
    %v49 = vld [vmem:[%s0 + $0x80] sm:$0xff]
    %v50 = vld [vmem:[%s0 + $0x88] sm:$0xff]
    %v51 = vld [vmem:[%s0 + $0x90] sm:$0xff]
    %v52 = vld [vmem:[%s0 + $0x98] sm:$0xff]
    %v53 = vld [vmem:[%s0 + $0xa0] sm:$0xff]
    %v54 = vld [vmem:[%s0 + $0xa8] sm:$0xff]
    %v55 = vld [vmem:[%s0 + $0xb0] sm:$0xff]
    %v56 = vld [vmem:[%s0 + $0xb8] sm:$0xff]
    %v57 = vld [vmem:[%s1] sm:$0xff]
    %v58 = vld [vmem:[%s1 + $0x8] sm:$0xff]
    %v59 = vld [vmem:[%s1 + $0x10] sm:$0xff]
    %v60 = vld [vmem:[%s1 + $0x18] sm:$0xff]
    %v61 = vld [vmem:[%s1 + $0x20] sm:$0xff]
    %v62 = vld [vmem:[%s1 + $0x28] sm:$0xff]
    %v63 = vld [vmem:[%s1 + $0x30] sm:$0xff]
    %v64 = vld [vmem:[%s1 + $0x38] sm:$0xff]
    %v65 = vld [vmem:[%s1 + $0x40] sm:$0xff]
    %v66 = vld [vmem:[%s1 + $0x48] sm:$0xff]
    %v67 = vld [vmem:[%s1 + $0x50] sm:$0xff]
    %v68 = vld [vmem:[%s1 + $0x58] sm:$0xff]
    %v69 = vld [vmem:[%s1 + $0x60] sm:$0xff]
    %v70 = vld [vmem:[%s1 + $0x68] sm:$0xff]
    %v71 = vld [vmem:[%s1 + $0x70] sm:$0xff]
    %v72 = vld [vmem:[%s1 + $0x78] sm:$0xff]
    %v73 = vld [vmem:[%s1 + $0x80] sm:$0xff]
    %v74 = vld [vmem:[%s1 + $0x88] sm:$0xff]
    %v75 = vld [vmem:[%s1 + $0x90] sm:$0xff]
    %v76 = vld [vmem:[%s1 + $0x98] sm:$0xff]
    %v77 = vld [vmem:[%s1 + $0xa0] sm:$0xff]
    %v78 = vld [vmem:[%s1 + $0xa8] sm:$0xff]
    %v79 = vld [vmem:[%s1 + $0xb0] sm:$0xff]
    %v80 = vld [vmem:[%s1 + $0xb8] sm:$0xff]
    %v81 = vld [vmem:[%s1 + $0xc0] sm:$0xff]
    %v82 = vld [vmem:[%s1 + $0xc8] sm:$0xff]
    %v83 = vld [vmem:[%s1 + $0xd0] sm:$0xff]
    %v84 = vld [vmem:[%s1 + $0xd8] sm:$0xff]
    %v85 = vld [vmem:[%s1 + $0xe0] sm:$0xff]
    %v86 = vld [vmem:[%s1 + $0xe8] sm:$0xff]
    %v87 = vld [vmem:[%s1 + $0xf0] sm:$0xff]
    %v88 = vld [vmem:[%s1 + $0xf8] sm:$0xff]
    %v89 = vld [vmem:[%s1 + $0x100] sm:$0xff]
    %v90 = vld [vmem:[%s1 + $0x108] sm:$0xff]
    %v91 = vld [vmem:[%s1 + $0x110] sm:$0xff]
    %v92 = vld [vmem:[%s1 + $0x118] sm:$0xff]
    %v93 = vld [vmem:[%s1 + $0x120] sm:$0xff]
    %v94 = vld [vmem:[%s1 + $0x128] sm:$0xff]
    %v95 = vld [vmem:[%s1 + $0x130] sm:$0xff]
    %v96 = vld [vmem:[%s1 + $0x138] sm:$0xff]
    %v97 = vld [vmem:[%s1 + $0x140] sm:$0xff]
    %v98 = vld [vmem:[%s1 + $0x148] sm:$0xff]
    %v99 = vld [vmem:[%s1 + $0x150] sm:$0xff]
    %v100 = vld [vmem:[%s1 + $0x158] sm:$0xff]
    %v101 = vld [vmem:[%s1 + $0x160] sm:$0xff]
    %v102 = vld [vmem:[%s1 + $0x168] sm:$0xff]
    %v103 = vld [vmem:[%s1 + $0x170] sm:$0xff]
    %v104 = vld [vmem:[%s1 + $0x178] sm:$0xff]
    %v105 = vld [vmem:[%s1 + $0x180] sm:$0xff]
    %v106 = vld [vmem:[%s1 + $0x188] sm:$0xff]
    %v107 = vld [vmem:[%s1 + $0x190] sm:$0xff]
    %v108 = vld [vmem:[%s1 + $0x198] sm:$0xff]
    %v109 = vld [vmem:[%s1 + $0x1a0] sm:$0xff]
    %v110 = vld [vmem:[%s1 + $0x1a8] sm:$0xff]
    %v111 = vld [vmem:[%s1 + $0x1b0] sm:$0xff]
    %v112 = vld [vmem:[%s1 + $0x1b8] sm:$0xff]
    %v113 = vld [vmem:[%s1 + $0x1c0] sm:$0xff]
    %v114 = vld [vmem:[%s1 + $0x1c8] sm:$0xff]
    %v115 = vld [vmem:[%s1 + $0x1d0] sm:$0xff]
    %v116 = vld [vmem:[%s1 + $0x1d8] sm:$0xff]
    %v117 = vld [vmem:[%s1 + $0x1e0] sm:$0xff]
    %v118 = vld [vmem:[%s1 + $0x1e8] sm:$0xff]
    %v119 = vld [vmem:[%s1 + $0x1f0] sm:$0xff]
    %v120 = vld [vmem:[%s1 + $0x1f8] sm:$0xff]
    %v121 = vld [vmem:[%s1 + $0x200] sm:$0xff]
    %v122 = vld [vmem:[%s1 + $0x208] sm:$0xff]
    %v123 = vld [vmem:[%s1 + $0x210] sm:$0xff]
    %v124 = vld [vmem:[%s1 + $0x218] sm:$0xff]
    %v125 = vld [vmem:[%s1 + $0x220] sm:$0xff]
    %v126 = vld [vmem:[%s1 + $0x228] sm:$0xff]
    %v127 = vld [vmem:[%s1 + $0x230] sm:$0xff]
    %v128 = vld [vmem:[%s1 + $0x238] sm:$0xff]
    %v129 = vld [vmem:[%s1 + $0x240] sm:$0xff]
    %v130 = vld [vmem:[%s1 + $0x248] sm:$0xff]
    %v131 = vld [vmem:[%s1 + $0x250] sm:$0xff]
    %v132 = vld [vmem:[%s1 + $0x258] sm:$0xff]
    %v133 = vld [vmem:[%s1 + $0x260] sm:$0xff]
    %v134 = vld [vmem:[%s1 + $0x268] sm:$0xff]
    %v135 = vld [vmem:[%s1 + $0x270] sm:$0xff]
    %v136 = vld [vmem:[%s1 + $0x278] sm:$0xff]
    %v137 = vld [vmem:[%s1 + $0x280] sm:$0xff]
    %v138 = vld [vmem:[%s1 + $0x288] sm:$0xff]
    %v139 = vld [vmem:[%s1 + $0x290] sm:$0xff]
    %v140 = vld [vmem:[%s1 + $0x298] sm:$0xff]
    %v141 = vld [vmem:[%s1 + $0x2a0] sm:$0xff]
    %v142 = vld [vmem:[%s1 + $0x2a8] sm:$0xff]
    %v143 = vld [vmem:[%s1 + $0x2b0] sm:$0xff]
    %v144 = vld [vmem:[%s1 + $0x2b8] sm:$0xff]
    %v145 = vld [vmem:[%s1 + $0x2c0] sm:$0xff]
    %v146 = vld [vmem:[%s1 + $0x2c8] sm:$0xff]
    %v147 = vld [vmem:[%s1 + $0x2d0] sm:$0xff]
    %v148 = vld [vmem:[%s1 + $0x2d8] sm:$0xff]
    %v149 = vld [vmem:[%s1 + $0x2e0] sm:$0xff]
    %v150 = vld [vmem:[%s1 + $0x2e8] sm:$0xff]
    %v151 = vld [vmem:[%s1 + $0x2f0] sm:$0xff]
    %v152 = vld [vmem:[%s1 + $0x2f8] sm:$0xff]
    %v153 = vld [vmem:[%s1 + $0x300] sm:$0xff]
    %v154 = vld [vmem:[%s1 + $0x308] sm:$0xff]
    %v155 = vld [vmem:[%s1 + $0x310] sm:$0xff]
    %v156 = vld [vmem:[%s1 + $0x318] sm:$0xff]
    %v157 = vld [vmem:[%s1 + $0x320] sm:$0xff]
    %v158 = vld [vmem:[%s1 + $0x328] sm:$0xff]
    %v159 = vld [vmem:[%s1 + $0x330] sm:$0xff]
    %v160 = vld [vmem:[%s1 + $0x338] sm:$0xff]
    %v161 = vld [vmem:[%s1 + $0x340] sm:$0xff]
    %v162 = vld [vmem:[%s1 + $0x348] sm:$0xff]
    %v163 = vld [vmem:[%s1 + $0x350] sm:$0xff]
    %v164 = vld [vmem:[%s1 + $0x358] sm:$0xff]
    %v165 = vld [vmem:[%s1 + $0x360] sm:$0xff]
    %v166 = vld [vmem:[%s1 + $0x368] sm:$0xff]
    %v167 = vld [vmem:[%s1 + $0x370] sm:$0xff]
    %v168 = vld [vmem:[%s1 + $0x378] sm:$0xff]
    %v169 = vld [vmem:[%s1 + $0x380] sm:$0xff]
    %v170 = vld [vmem:[%s1 + $0x388] sm:$0xff]
    %v171 = vld [vmem:[%s1 + $0x390] sm:$0xff]
    %v172 = vld [vmem:[%s1 + $0x398] sm:$0xff]
    %v173 = vld [vmem:[%s1 + $0x3a0] sm:$0xff]
    %v174 = vld [vmem:[%s1 + $0x3a8] sm:$0xff]
    %v175 = vld [vmem:[%s1 + $0x3b0] sm:$0xff]
    %v176 = vld [vmem:[%s1 + $0x3b8] sm:$0xff]
    %v177 = vld [vmem:[%s1 + $0x3c0] sm:$0xff]
    %v178 = vld [vmem:[%s1 + $0x3c8] sm:$0xff]
    %v179 = vld [vmem:[%s1 + $0x3d0] sm:$0xff]
    %v180 = vld [vmem:[%s1 + $0x3d8] sm:$0xff]
    %v181 = vld [vmem:[%s1 + $0x3e0] sm:$0xff]
    %v182 = vld [vmem:[%s1 + $0x3e8] sm:$0xff]
    %v183 = vld [vmem:[%s1 + $0x3f0] sm:$0xff]
    %v184 = vld [vmem:[%s1 + $0x3f8] sm:$0xff]
    %v185 = vld [vmem:[%s1 + $0x400] sm:$0xff]
    %v186 = vld [vmem:[%s1 + $0x408] sm:$0xff]
    %v187 = vld [vmem:[%s1 + $0x410] sm:$0xff]
    %v188 = vld [vmem:[%s1 + $0x418] sm:$0xff]
    %v189 = vld [vmem:[%s1 + $0x420] sm:$0xff]
    %v190 = vld [vmem:[%s1 + $0x428] sm:$0xff]
    %v191 = vld [vmem:[%s1 + $0x430] sm:$0xff]
    %v192 = vld [vmem:[%s1 + $0x438] sm:$0xff]
    %v193 = vld [vmem:[%s1 + $0x440] sm:$0xff]
    %v194 = vld [vmem:[%s1 + $0x448] sm:$0xff]
    %v195 = vld [vmem:[%s1 + $0x450] sm:$0xff]
    %v196 = vld [vmem:[%s1 + $0x458] sm:$0xff]
    %v197 = vld [vmem:[%s1 + $0x460] sm:$0xff]
    %v198 = vld [vmem:[%s1 + $0x468] sm:$0xff]
    %v199 = vld [vmem:[%s1 + $0x470] sm:$0xff]
    %v200 = vld [vmem:[%s1 + $0x478] sm:$0xff]
    %v201 = vld [vmem:[%s1 + $0x480] sm:$0xff]
    %v202 = vld [vmem:[%s1 + $0x488] sm:$0xff]
    %v203 = vld [vmem:[%s1 + $0x490] sm:$0xff]
    %v204 = vld [vmem:[%s1 + $0x498] sm:$0xff]
    %v205 = vld [vmem:[%s1 + $0x4a0] sm:$0xff]
    %v206 = vld [vmem:[%s1 + $0x4a8] sm:$0xff]
    %v207 = vld [vmem:[%s1 + $0x4b0] sm:$0xff]
    %v208 = vld [vmem:[%s1 + $0x4b8] sm:$0xff]
    %v209 = vld [vmem:[%s1 + $0x4c0] sm:$0xff]
    %v210 = vld [vmem:[%s1 + $0x4c8] sm:$0xff]
    %v211 = vld [vmem:[%s1 + $0x4d0] sm:$0xff]
    %v212 = vld [vmem:[%s1 + $0x4d8] sm:$0xff]
    %v213 = vld [vmem:[%s1 + $0x4e0] sm:$0xff]
    %v214 = vld [vmem:[%s1 + $0x4e8] sm:$0xff]
    %v215 = vld [vmem:[%s1 + $0x4f0] sm:$0xff]
    %v216 = vld [vmem:[%s1 + $0x4f8] sm:$0xff]
    %v217 = vld [vmem:[%s1 + $0x500] sm:$0xff]
    %v218 = vld [vmem:[%s1 + $0x508] sm:$0xff]
    %v219 = vld [vmem:[%s1 + $0x510] sm:$0xff]
    %v220 = vld [vmem:[%s1 + $0x518] sm:$0xff]
    %v221 = vld [vmem:[%s1 + $0x520] sm:$0xff]
    %v222 = vld [vmem:[%s1 + $0x528] sm:$0xff]
    %v223 = vld [vmem:[%s1 + $0x530] sm:$0xff]
    %v224 = vld [vmem:[%s1 + $0x538] sm:$0xff]
    %v225 = vld [vmem:[%s1 + $0x540] sm:$0xff]
    %v226 = vld [vmem:[%s1 + $0x548] sm:$0xff]
    %v227 = vld [vmem:[%s1 + $0x550] sm:$0xff]
    %v228 = vld [vmem:[%s1 + $0x558] sm:$0xff]
    %v229 = vld [vmem:[%s1 + $0x560] sm:$0xff]
    %v230 = vld [vmem:[%s1 + $0x568] sm:$0xff]
    %v231 = vld [vmem:[%s1 + $0x570] sm:$0xff]
    %v232 = vld [vmem:[%s1 + $0x578] sm:$0xff]
    %v233 = vld [vmem:[%s1 + $0x580] sm:$0xff]
    %v234 = vld [vmem:[%s1 + $0x588] sm:$0xff]
    %v235 = vld [vmem:[%s1 + $0x590] sm:$0xff]
    %v236 = vld [vmem:[%s1 + $0x598] sm:$0xff]
    %v237 = vld [vmem:[%s1 + $0x5a0] sm:$0xff]
    %v238 = vld [vmem:[%s1 + $0x5a8] sm:$0xff]
    %v239 = vld [vmem:[%s1 + $0x5b0] sm:$0xff]
    %v240 = vld [vmem:[%s1 + $0x5b8] sm:$0xff]
    %v241 = vld [vmem:[%s1 + $0x5c0] sm:$0xff]
    %v242 = vld [vmem:[%s1 + $0x5c8] sm:$0xff]
    %v243 = vld [vmem:[%s1 + $0x5d0] sm:$0xff]
    %v244 = vld [vmem:[%s1 + $0x5d8] sm:$0xff]
    %v245 = vld [vmem:[%s1 + $0x5e0] sm:$0xff]
    %v246 = vld [vmem:[%s1 + $0x5e8] sm:$0xff]
    %v247 = vld [vmem:[%s1 + $0x5f0] sm:$0xff]
    %v248 = vld [vmem:[%s1 + $0x5f8] sm:$0xff]
    %v249 = vld [vmem:[%s1 + $0x600] sm:$0xff]
    %v250 = vld [vmem:[%s1 + $0x608] sm:$0xff]
    %v251 = vld [vmem:[%s1 + $0x610] sm:$0xff]
    %v252 = vld [vmem:[%s1 + $0x618] sm:$0xff]
    %v253 = vld [vmem:[%s1 + $0x620] sm:$0xff]
    %v254 = vld [vmem:[%s1 + $0x628] sm:$0xff]
    %v255 = vld [vmem:[%s1 + $0x630] sm:$0xff]
    %v256 = vld [vmem:[%s1 + $0x638] sm:$0xff]
    %v257 = vld [vmem:[%s1 + $0x640] sm:$0xff]
    %v258 = vld [vmem:[%s1 + $0x648] sm:$0xff]
    %v259 = vld [vmem:[%s1 + $0x650] sm:$0xff]
    %v260 = vld [vmem:[%s1 + $0x658] sm:$0xff]
    %v261 = vld [vmem:[%s1 + $0x660] sm:$0xff]
    %v262 = vld [vmem:[%s1 + $0x668] sm:$0xff]
    %v263 = vld [vmem:[%s1 + $0x670] sm:$0xff]
    %v264 = vld [vmem:[%s1 + $0x678] sm:$0xff]
    %v265 = vld [vmem:[%s1 + $0x680] sm:$0xff]
    %v266 = vld [vmem:[%s1 + $0x688] sm:$0xff]
    %v267 = vld [vmem:[%s1 + $0x690] sm:$0xff]
    %v268 = vld [vmem:[%s1 + $0x698] sm:$0xff]
    %v269 = vld [vmem:[%s1 + $0x6a0] sm:$0xff]
    %v270 = vld [vmem:[%s1 + $0x6a8] sm:$0xff]
    %v271 = vld [vmem:[%s1 + $0x6b0] sm:$0xff]
    %v272 = vld [vmem:[%s1 + $0x6b8] sm:$0xff]
    %v273 = vld [vmem:[%s1 + $0x6c0] sm:$0xff]
    %v274 = vld [vmem:[%s1 + $0x6c8] sm:$0xff]
    %v275 = vld [vmem:[%s1 + $0x6d0] sm:$0xff]
    %v276 = vld [vmem:[%s1 + $0x6d8] sm:$0xff]
    %v277 = vld [vmem:[%s1 + $0x6e0] sm:$0xff]
    %v278 = vld [vmem:[%s1 + $0x6e8] sm:$0xff]
    %v279 = vld [vmem:[%s1 + $0x6f0] sm:$0xff]
    %v280 = vld [vmem:[%s1 + $0x6f8] sm:$0xff]
    %v281 = vld [vmem:[%s1 + $0x700] sm:$0xff]
    %v282 = vld [vmem:[%s1 + $0x708] sm:$0xff]
    %v283 = vld [vmem:[%s1 + $0x710] sm:$0xff]
    %v284 = vld [vmem:[%s1 + $0x718] sm:$0xff]
    %v285 = vld [vmem:[%s1 + $0x720] sm:$0xff]
    %v286 = vld [vmem:[%s1 + $0x728] sm:$0xff]
    %v287 = vld [vmem:[%s1 + $0x730] sm:$0xff]
    %v288 = vld [vmem:[%s1 + $0x738] sm:$0xff]
    %v289 = vld [vmem:[%s1 + $0x740] sm:$0xff]
    %v290 = vld [vmem:[%s1 + $0x748] sm:$0xff]
    %v291 = vld [vmem:[%s1 + $0x750] sm:$0xff]
    %v292 = vld [vmem:[%s1 + $0x758] sm:$0xff]
    %v293 = vld [vmem:[%s1 + $0x760] sm:$0xff]
    %v294 = vld [vmem:[%s1 + $0x768] sm:$0xff]
    %v295 = vld [vmem:[%s1 + $0x770] sm:$0xff]
    %v296 = vld [vmem:[%s1 + $0x778] sm:$0xff]
    %v297 = vld [vmem:[%s1 + $0x780] sm:$0xff]
    %v298 = vld [vmem:[%s1 + $0x788] sm:$0xff]
    %v299 = vld [vmem:[%s1 + $0x790] sm:$0xff]
    %v300 = vld [vmem:[%s1 + $0x798] sm:$0xff]
    %v301 = vld [vmem:[%s1 + $0x7a0] sm:$0xff]
    %v302 = vld [vmem:[%s1 + $0x7a8] sm:$0xff]
    %v303 = vld [vmem:[%s1 + $0x7b0] sm:$0xff]
    %v304 = vld [vmem:[%s1 + $0x7b8] sm:$0xff]
    %v305 = vld [vmem:[%s1 + $0x7c0] sm:$0xff]
    %v306 = vld [vmem:[%s1 + $0x7c8] sm:$0xff]
    %v307 = vld [vmem:[%s1 + $0x7d0] sm:$0xff]
    %v308 = vld [vmem:[%s1 + $0x7d8] sm:$0xff]
    %v309 = vld [vmem:[%s1 + $0x7e0] sm:$0xff]
    %v310 = vld [vmem:[%s1 + $0x7e8] sm:$0xff]
    %v311 = vld [vmem:[%s1 + $0x7f0] sm:$0xff]
    %v312 = vld [vmem:[%s1 + $0x7f8] sm:$0xff]
    %v313 = vld [vmem:[%s1 + $0x800] sm:$0xff]
    %v314 = vld [vmem:[%s1 + $0x808] sm:$0xff]
    %v315 = vld [vmem:[%s1 + $0x810] sm:$0xff]
    %v316 = vld [vmem:[%s1 + $0x818] sm:$0xff]
    %v317 = vld [vmem:[%s1 + $0x820] sm:$0xff]
    %v318 = vld [vmem:[%s1 + $0x828] sm:$0xff]
    %v319 = vld [vmem:[%s1 + $0x830] sm:$0xff]
    %v320 = vld [vmem:[%s1 + $0x838] sm:$0xff]
    %v321 = vld [vmem:[%s1 + $0x840] sm:$0xff]
    %v322 = vld [vmem:[%s1 + $0x848] sm:$0xff]
    %v323 = vld [vmem:[%s1 + $0x850] sm:$0xff]
    %v324 = vld [vmem:[%s1 + $0x858] sm:$0xff]
    %v325 = vld [vmem:[%s1 + $0x860] sm:$0xff]
    %v326 = vld [vmem:[%s1 + $0x868] sm:$0xff]
    %v327 = vld [vmem:[%s1 + $0x870] sm:$0xff]
    %v328 = vld [vmem:[%s1 + $0x878] sm:$0xff]
    %v329 = vld [vmem:[%s1 + $0x880] sm:$0xff]
    %v330 = vld [vmem:[%s1 + $0x888] sm:$0xff]
    %v331 = vld [vmem:[%s1 + $0x890] sm:$0xff]
    %v332 = vld [vmem:[%s1 + $0x898] sm:$0xff]
    %v333 = vld [vmem:[%s1 + $0x8a0] sm:$0xff]
    %v334 = vld [vmem:[%s1 + $0x8a8] sm:$0xff]
    %v335 = vld [vmem:[%s1 + $0x8b0] sm:$0xff]
    %v336 = vld [vmem:[%s1 + $0x8b8] sm:$0xff]
    %v337 = vld [vmem:[%s1 + $0x8c0] sm:$0xff]
    %v338 = vld [vmem:[%s1 + $0x8c8] sm:$0xff]
    %v339 = vld [vmem:[%s1 + $0x8d0] sm:$0xff]
    %v340 = vld [vmem:[%s1 + $0x8d8] sm:$0xff]
    %v341 = vld [vmem:[%s1 + $0x8e0] sm:$0xff]
    %v342 = vld [vmem:[%s1 + $0x8e8] sm:$0xff]
    %v343 = vld [vmem:[%s1 + $0x8f0] sm:$0xff]
    %v344 = vld [vmem:[%s1 + $0x8f8] sm:$0xff]
    %v345 = vld [vmem:[%s1 + $0x900] sm:$0xff]
    %v346 = vld [vmem:[%s1 + $0x908] sm:$0xff]
    %v347 = vld [vmem:[%s1 + $0x910] sm:$0xff]
    %v348 = vld [vmem:[%s1 + $0x918] sm:$0xff]
    %v349 = vld [vmem:[%s1 + $0x920] sm:$0xff]
    %v350 = vld [vmem:[%s1 + $0x928] sm:$0xff]
    %v351 = vld [vmem:[%s1 + $0x930] sm:$0xff]
    %v352 = vld [vmem:[%s1 + $0x938] sm:$0xff]
    %v353 = vld [vmem:[%s1 + $0x940] sm:$0xff]
    %v354 = vld [vmem:[%s1 + $0x948] sm:$0xff]
    %v355 = vld [vmem:[%s1 + $0x950] sm:$0xff]
    %v356 = vld [vmem:[%s1 + $0x958] sm:$0xff]
    %v357 = vld [vmem:[%s1 + $0x960] sm:$0xff]
    %v358 = vld [vmem:[%s1 + $0x968] sm:$0xff]
    %v359 = vld [vmem:[%s1 + $0x970] sm:$0xff]
    %v360 = vld [vmem:[%s1 + $0x978] sm:$0xff]
    %v361 = vld [vmem:[%s1 + $0x980] sm:$0xff]
    %v362 = vld [vmem:[%s1 + $0x988] sm:$0xff]
    %v363 = vld [vmem:[%s1 + $0x990] sm:$0xff]
    %v364 = vld [vmem:[%s1 + $0x998] sm:$0xff]
    %v365 = vld [vmem:[%s1 + $0x9a0] sm:$0xff]
    %v366 = vld [vmem:[%s1 + $0x9a8] sm:$0xff]
    %v367 = vld [vmem:[%s1 + $0x9b0] sm:$0xff]
    %v368 = vld [vmem:[%s1 + $0x9b8] sm:$0xff]
    %v369 = vld [vmem:[%s1 + $0x9c0] sm:$0xff]
    %v370 = vld [vmem:[%s1 + $0x9c8] sm:$0xff]
    %v371 = vld [vmem:[%s1 + $0x9d0] sm:$0xff]
    %v372 = vld [vmem:[%s1 + $0x9d8] sm:$0xff]
    %v373 = vld [vmem:[%s1 + $0x9e0] sm:$0xff]
    %v374 = vld [vmem:[%s1 + $0x9e8] sm:$0xff]
    %v375 = vld [vmem:[%s1 + $0x9f0] sm:$0xff]
    %v376 = vld [vmem:[%s1 + $0x9f8] sm:$0xff]
    %v377 = vld [vmem:[%s1 + $0xa00] sm:$0xff]
    %v378 = vld [vmem:[%s1 + $0xa08] sm:$0xff]
    %v379 = vld [vmem:[%s1 + $0xa10] sm:$0xff]
    %v380 = vld [vmem:[%s1 + $0xa18] sm:$0xff]
    %v381 = vld [vmem:[%s1 + $0xa20] sm:$0xff]
    %v382 = vld [vmem:[%s1 + $0xa28] sm:$0xff]
    %v383 = vld [vmem:[%s1 + $0xa30] sm:$0xff]
    %v384 = vld [vmem:[%s1 + $0xa38] sm:$0xff]
    %v385 = vld [vmem:[%s1 + $0xa40] sm:$0xff]
    %v386 = vld [vmem:[%s1 + $0xa48] sm:$0xff]
    %v387 = vld [vmem:[%s1 + $0xa50] sm:$0xff]
    %v388 = vld [vmem:[%s1 + $0xa58] sm:$0xff]
    %v389 = vld [vmem:[%s1 + $0xa60] sm:$0xff]
    %v390 = vld [vmem:[%s1 + $0xa68] sm:$0xff]
    %v391 = vld [vmem:[%s1 + $0xa70] sm:$0xff]
    %v392 = vld [vmem:[%s1 + $0xa78] sm:$0xff]
    %v393 = vld [vmem:[%s1 + $0xa80] sm:$0xff]
    %v394 = vld [vmem:[%s1 + $0xa88] sm:$0xff]
    %v395 = vld [vmem:[%s1 + $0xa90] sm:$0xff]
    %v396 = vld [vmem:[%s1 + $0xa98] sm:$0xff]
    %v397 = vld [vmem:[%s1 + $0xaa0] sm:$0xff]
    %v398 = vld [vmem:[%s1 + $0xaa8] sm:$0xff]
    %v399 = vld [vmem:[%s1 + $0xab0] sm:$0xff]
    %v400 = vld [vmem:[%s1 + $0xab8] sm:$0xff]
    %v401 = vld [vmem:[%s1 + $0xac0] sm:$0xff]
    %v402 = vld [vmem:[%s1 + $0xac8] sm:$0xff]
    %v403 = vld [vmem:[%s1 + $0xad0] sm:$0xff]
    %v404 = vld [vmem:[%s1 + $0xad8] sm:$0xff]
    %v405 = vld [vmem:[%s1 + $0xae0] sm:$0xff]
    %v406 = vld [vmem:[%s1 + $0xae8] sm:$0xff]
    %v407 = vld [vmem:[%s1 + $0xaf0] sm:$0xff]
    %v408 = vld [vmem:[%s1 + $0xaf8] sm:$0xff]
    %v409 = vld [vmem:[%s1 + $0xb00] sm:$0xff]
    %v410 = vld [vmem:[%s1 + $0xb08] sm:$0xff]
    %v411 = vld [vmem:[%s1 + $0xb10] sm:$0xff]
    %v412 = vld [vmem:[%s1 + $0xb18] sm:$0xff]
    %v413 = vld [vmem:[%s1 + $0xb20] sm:$0xff]
    %v414 = vld [vmem:[%s1 + $0xb28] sm:$0xff]
    %v415 = vld [vmem:[%s1 + $0xb30] sm:$0xff]
    %v416 = vld [vmem:[%s1 + $0xb38] sm:$0xff]
    %v417 = vld [vmem:[%s1 + $0xb40] sm:$0xff]
    %v418 = vld [vmem:[%s1 + $0xb48] sm:$0xff]
    %v419 = vld [vmem:[%s1 + $0xb50] sm:$0xff]
    %v420 = vld [vmem:[%s1 + $0xb58] sm:$0xff]
    %v421 = vld [vmem:[%s1 + $0xb60] sm:$0xff]
    %v422 = vld [vmem:[%s1 + $0xb68] sm:$0xff]
    %v423 = vld [vmem:[%s1 + $0xb70] sm:$0xff]
    %v424 = vld [vmem:[%s1 + $0xb78] sm:$0xff]
    %v425 = vld [vmem:[%s1 + $0xb80] sm:$0xff]
    %v426 = vld [vmem:[%s1 + $0xb88] sm:$0xff]
    %v427 = vld [vmem:[%s1 + $0xb90] sm:$0xff]
    %v428 = vld [vmem:[%s1 + $0xb98] sm:$0xff]
    %v429 = vld [vmem:[%s1 + $0xba0] sm:$0xff]
    %v430 = vld [vmem:[%s1 + $0xba8] sm:$0xff]
    %v431 = vld [vmem:[%s1 + $0xbb0] sm:$0xff]
    %v432 = vld [vmem:[%s1 + $0xbb8] sm:$0xff]
    %v433 = vld [vmem:[%s1 + $0xbc0] sm:$0xff]
    %v434 = vld [vmem:[%s1 + $0xbc8] sm:$0xff]
    %v435 = vld [vmem:[%s1 + $0xbd0] sm:$0xff]
    %v436 = vld [vmem:[%s1 + $0xbd8] sm:$0xff]
    %v437 = vld [vmem:[%s1 + $0xbe0] sm:$0xff]
    %v438 = vld [vmem:[%s1 + $0xbe8] sm:$0xff]
    %v439 = vld [vmem:[%s1 + $0xbf0] sm:$0xff]
    %v440 = vld [vmem:[%s1 + $0xbf8] sm:$0xff]
    %v441 = vld [vmem:[%s2] sm:$0x1]
    %v443 = vlaneseq
    %v444 = vshrl.u32 %v443, 7
    %v445 = vsub.s32 0, %v444
    %v446 = vrot.slane %v441, %v445
    %448 = vmatprep.subr.mxu0 0.0
    %449 = vmatpush1.msra.mxu0 %v57
    %450 = vmatprep.subr.mxu0 0.0
    %451 = vmatpush1.msra.mxu0 %v58
    %452 = vmatprep.subr.mxu0 0.0
    %453 = vmatpush1.msra.mxu0 %v59
    %454 = vmatprep.subr.mxu0 0.0
    %455 = vmatpush1.msra.mxu0 %v60
    %456 = vmatprep.subr.mxu0 0.0
    %457 = vmatpush1.msra.mxu0 %v61
    %458 = vmatprep.subr.mxu0 0.0
    %459 = vmatpush1.msra.mxu0 %v62
    %460 = vmatprep.subr.mxu0 0.0
    %461 = vmatpush1.msra.mxu0 %v63
    %462 = vmatprep.subr.mxu0 0.0
    %463 = vmatpush1.msra.mxu0 %v64
    %464 = vmatprep.subr.mxu0 0.0
    %465 = vmatpush1.msra.mxu0 %v65
    %466 = vmatprep.subr.mxu0 0.0
    %467 = vmatpush1.msra.mxu0 %v66
    %468 = vmatprep.subr.mxu0 0.0
    %469 = vmatpush1.msra.mxu0 %v67
    %470 = vmatprep.subr.mxu0 0.0
    %471 = vmatpush1.msra.mxu0 %v68
    %472 = vmatprep.subr.mxu0 0.0
    %473 = vmatpush1.msra.mxu0 %v69
    %474 = vmatprep.subr.mxu0 0.0
    %475 = vmatpush1.msra.mxu0 %v70
    %476 = vmatprep.subr.mxu0 0.0
    %477 = vmatpush1.msra.mxu0 %v71
    %478 = vmatprep.subr.mxu0 0.0
    %479 = vmatpush1.msra.mxu0 %v72
    %480 = vmatprep.subr.mxu0 0.0
    %481 = vmatpush1.msra.mxu0 %v73
    %482 = vmatprep.subr.mxu0 0.0
    %483 = vmatpush1.msra.mxu0 %v74
    %484 = vmatprep.subr.mxu0 0.0
    %485 = vmatpush1.msra.mxu0 %v75
    %486 = vmatprep.subr.mxu0 0.0
    %487 = vmatpush1.msra.mxu0 %v76
    %488 = vmatprep.subr.mxu0 0.0
    %489 = vmatpush1.msra.mxu0 %v77
    %490 = vmatprep.subr.mxu0 0.0
    %491 = vmatpush1.msra.mxu0 %v78
    %492 = vmatprep.subr.mxu0 0.0
    %493 = vmatpush1.msra.mxu0 %v79
    %494 = vmatprep.subr.mxu0 0.0
    %495 = vmatpush1.msra.mxu0 %v80
    %496 = vmatprep.subr.mxu0 0.0
    %497 = vmatpush1.msra.mxu0 %v81
    %498 = vmatprep.subr.mxu0 0.0
    %499 = vmatpush1.msra.mxu0 %v82
    %500 = vmatprep.subr.mxu0 0.0
    %501 = vmatpush1.msra.mxu0 %v83
    %502 = vmatprep.subr.mxu0 0.0
    %503 = vmatpush1.msra.mxu0 %v84
    %504 = vmatprep.subr.mxu0 0.0
    %505 = vmatpush1.msra.mxu0 %v85
    %506 = vmatprep.subr.mxu0 0.0
    %507 = vmatpush1.msra.mxu0 %v86
    %508 = vmatprep.subr.mxu0 0.0
    %509 = vmatpush1.msra.mxu0 %v87
    %510 = vmatprep.subr.mxu0 0.0
    %511 = vmatpush1.msra.mxu0 %v88
    %512 = vmatprep.mubr.f32.mxu0 %v34
    %513 = vmatmul.mubr.f32.gmra.mrb[0].mxu0 %v33
    %v514 = vpop.f32.mrb[0].mxu0
    %v515 = vadd.f32 %v446, %v514
    %v516 = vpop.f32.mrb[0].mxu0
    %517 = vdwg.mxu0
    %518 = vmatprep.subr.mxu0 0.0
    %519 = vmatpush1.msra.mxu0 %v89
    %520 = vmatprep.subr.mxu0 0.0
    %521 = vmatpush1.msra.mxu0 %v90
    %522 = vmatprep.subr.mxu0 0.0
    %523 = vmatpush1.msra.mxu0 %v91
    %524 = vmatprep.subr.mxu0 0.0
    %525 = vmatpush1.msra.mxu0 %v92
    %526 = vmatprep.subr.mxu0 0.0
    %527 = vmatpush1.msra.mxu0 %v93
    %528 = vmatprep.subr.mxu0 0.0
    %529 = vmatpush1.msra.mxu0 %v94
    %530 = vmatprep.subr.mxu0 0.0
    %531 = vmatpush1.msra.mxu0 %v95
    %532 = vmatprep.subr.mxu0 0.0
    %533 = vmatpush1.msra.mxu0 %v96
    %534 = vmatprep.subr.mxu0 0.0
    %535 = vmatpush1.msra.mxu0 %v97
    %536 = vmatprep.subr.mxu0 0.0
    %537 = vmatpush1.msra.mxu0 %v98
    %538 = vmatprep.subr.mxu0 0.0
    %539 = vmatpush1.msra.mxu0 %v99
    %540 = vmatprep.subr.mxu0 0.0
    %541 = vmatpush1.msra.mxu0 %v100
    %542 = vmatprep.subr.mxu0 0.0
    %543 = vmatpush1.msra.mxu0 %v101
    %544 = vmatprep.subr.mxu0 0.0
    %545 = vmatpush1.msra.mxu0 %v102
    %546 = vmatprep.subr.mxu0 0.0
    %547 = vmatpush1.msra.mxu0 %v103
    %548 = vmatprep.subr.mxu0 0.0
    %549 = vmatpush1.msra.mxu0 %v104
    %550 = vmatprep.subr.mxu0 0.0
    %551 = vmatpush1.msra.mxu0 %v105
    %552 = vmatprep.subr.mxu0 0.0
    %553 = vmatpush1.msra.mxu0 %v106
    %554 = vmatprep.subr.mxu0 0.0
    %555 = vmatpush1.msra.mxu0 %v107
    %556 = vmatprep.subr.mxu0 0.0
    %557 = vmatpush1.msra.mxu0 %v108
    %558 = vmatprep.subr.mxu0 0.0
    %559 = vmatpush1.msra.mxu0 %v109
    %560 = vmatprep.subr.mxu0 0.0
    %561 = vmatpush1.msra.mxu0 %v110
    %562 = vmatprep.subr.mxu0 0.0
    %563 = vmatpush1.msra.mxu0 %v111
    %564 = vmatprep.subr.mxu0 0.0
    %565 = vmatpush1.msra.mxu0 %v112
    %566 = vmatprep.subr.mxu0 0.0
    %567 = vmatpush1.msra.mxu0 %v113
    %568 = vmatprep.subr.mxu0 0.0
    %569 = vmatpush1.msra.mxu0 %v114
    %570 = vmatprep.subr.mxu0 0.0
    %571 = vmatpush1.msra.mxu0 %v115
    %572 = vmatprep.subr.mxu0 0.0
    %573 = vmatpush1.msra.mxu0 %v116
    %574 = vmatprep.subr.mxu0 0.0
    %575 = vmatpush1.msra.mxu0 %v117
    %576 = vmatprep.subr.mxu0 0.0
    %577 = vmatpush1.msra.mxu0 %v118
    %578 = vmatprep.subr.mxu0 0.0
    %579 = vmatpush1.msra.mxu0 %v119
    %580 = vmatprep.subr.mxu0 0.0
    %581 = vmatpush1.msra.mxu0 %v120
    %582 = vmatprep.mubr.f32.mxu0 %v36
    %583 = vmatmul.mubr.f32.gmra.mrb[0].mxu0 %v35
    %v584 = vpop.f32.mrb[0].mxu0
    %v585 = vadd.f32 %v515, %v584
    %v586 = vpop.f32.mrb[0].mxu0
    %587 = vdwg.mxu0
    %588 = vmatprep.subr.mxu0 0.0
    %589 = vmatpush1.msra.mxu0 %v121
    %590 = vmatprep.subr.mxu0 0.0
    %591 = vmatpush1.msra.mxu0 %v122
    %592 = vmatprep.subr.mxu0 0.0
    %593 = vmatpush1.msra.mxu0 %v123
    %594 = vmatprep.subr.mxu0 0.0
    %595 = vmatpush1.msra.mxu0 %v124
    %596 = vmatprep.subr.mxu0 0.0
    %597 = vmatpush1.msra.mxu0 %v125
    %598 = vmatprep.subr.mxu0 0.0
    %599 = vmatpush1.msra.mxu0 %v126
    %600 = vmatprep.subr.mxu0 0.0
    %601 = vmatpush1.msra.mxu0 %v127
    %602 = vmatprep.subr.mxu0 0.0
    %603 = vmatpush1.msra.mxu0 %v128
    %604 = vmatprep.subr.mxu0 0.0
    %605 = vmatpush1.msra.mxu0 %v129
    %606 = vmatprep.subr.mxu0 0.0
    %607 = vmatpush1.msra.mxu0 %v130
    %608 = vmatprep.subr.mxu0 0.0
    %609 = vmatpush1.msra.mxu0 %v131
    %610 = vmatprep.subr.mxu0 0.0
    %611 = vmatpush1.msra.mxu0 %v132
    %612 = vmatprep.subr.mxu0 0.0
    %613 = vmatpush1.msra.mxu0 %v133
    %614 = vmatprep.subr.mxu0 0.0
    %615 = vmatpush1.msra.mxu0 %v134
    %616 = vmatprep.subr.mxu0 0.0
    %617 = vmatpush1.msra.mxu0 %v135
    %618 = vmatprep.subr.mxu0 0.0
    %619 = vmatpush1.msra.mxu0 %v136
    %620 = vmatprep.subr.mxu0 0.0
    %621 = vmatpush1.msra.mxu0 %v137
    %622 = vmatprep.subr.mxu0 0.0
    %623 = vmatpush1.msra.mxu0 %v138
    %624 = vmatprep.subr.mxu0 0.0
    %625 = vmatpush1.msra.mxu0 %v139
    %626 = vmatprep.subr.mxu0 0.0
    %627 = vmatpush1.msra.mxu0 %v140
    %628 = vmatprep.subr.mxu0 0.0
    %629 = vmatpush1.msra.mxu0 %v141
    %630 = vmatprep.subr.mxu0 0.0
    %631 = vmatpush1.msra.mxu0 %v142
    %632 = vmatprep.subr.mxu0 0.0
    %633 = vmatpush1.msra.mxu0 %v143
    %634 = vmatprep.subr.mxu0 0.0
    %635 = vmatpush1.msra.mxu0 %v144
    %636 = vmatprep.subr.mxu0 0.0
    %637 = vmatpush1.msra.mxu0 %v145
    %638 = vmatprep.subr.mxu0 0.0
    %639 = vmatpush1.msra.mxu0 %v146
    %640 = vmatprep.subr.mxu0 0.0
    %641 = vmatpush1.msra.mxu0 %v147
    %642 = vmatprep.subr.mxu0 0.0
    %643 = vmatpush1.msra.mxu0 %v148
    %644 = vmatprep.subr.mxu0 0.0
    %645 = vmatpush1.msra.mxu0 %v149
    %646 = vmatprep.subr.mxu0 0.0
    %647 = vmatpush1.msra.mxu0 %v150
    %648 = vmatprep.subr.mxu0 0.0
    %649 = vmatpush1.msra.mxu0 %v151
    %650 = vmatprep.subr.mxu0 0.0
    %651 = vmatpush1.msra.mxu0 %v152
    %652 = vmatprep.mubr.f32.mxu0 %v38
    %653 = vmatmul.mubr.f32.gmra.mrb[0].mxu0 %v37
    %v654 = vpop.f32.mrb[0].mxu0
    %v655 = vadd.f32 %v585, %v654
    %v656 = vpop.f32.mrb[0].mxu0
    %657 = vdwg.mxu0
    %658 = vmatprep.subr.mxu0 0.0
    %659 = vmatpush1.msra.mxu0 %v153
    %660 = vmatprep.subr.mxu0 0.0
    %661 = vmatpush1.msra.mxu0 %v154
    %662 = vmatprep.subr.mxu0 0.0
    %663 = vmatpush1.msra.mxu0 %v155
    %664 = vmatprep.subr.mxu0 0.0
    %665 = vmatpush1.msra.mxu0 %v156
    %666 = vmatprep.subr.mxu0 0.0
    %667 = vmatpush1.msra.mxu0 %v157
    %668 = vmatprep.subr.mxu0 0.0
    %669 = vmatpush1.msra.mxu0 %v158
    %670 = vmatprep.subr.mxu0 0.0
    %671 = vmatpush1.msra.mxu0 %v159
    %672 = vmatprep.subr.mxu0 0.0
    %673 = vmatpush1.msra.mxu0 %v160
    %674 = vmatprep.subr.mxu0 0.0
    %675 = vmatpush1.msra.mxu0 %v161
    %676 = vmatprep.subr.mxu0 0.0
    %677 = vmatpush1.msra.mxu0 %v162
    %678 = vmatprep.subr.mxu0 0.0
    %679 = vmatpush1.msra.mxu0 %v163
    %680 = vmatprep.subr.mxu0 0.0
    %681 = vmatpush1.msra.mxu0 %v164
    %682 = vmatprep.subr.mxu0 0.0
    %683 = vmatpush1.msra.mxu0 %v165
    %684 = vmatprep.subr.mxu0 0.0
    %685 = vmatpush1.msra.mxu0 %v166
    %686 = vmatprep.subr.mxu0 0.0
    %687 = vmatpush1.msra.mxu0 %v167
    %688 = vmatprep.subr.mxu0 0.0
    %689 = vmatpush1.msra.mxu0 %v168
    %690 = vmatprep.subr.mxu0 0.0
    %691 = vmatpush1.msra.mxu0 %v169
    %692 = vmatprep.subr.mxu0 0.0
    %693 = vmatpush1.msra.mxu0 %v170
    %694 = vmatprep.subr.mxu0 0.0
    %695 = vmatpush1.msra.mxu0 %v171
    %696 = vmatprep.subr.mxu0 0.0
    %697 = vmatpush1.msra.mxu0 %v172
    %698 = vmatprep.subr.mxu0 0.0
    %699 = vmatpush1.msra.mxu0 %v173
    %700 = vmatprep.subr.mxu0 0.0
    %701 = vmatpush1.msra.mxu0 %v174
    %702 = vmatprep.subr.mxu0 0.0
    %703 = vmatpush1.msra.mxu0 %v175
    %704 = vmatprep.subr.mxu0 0.0
    %705 = vmatpush1.msra.mxu0 %v176
    %706 = vmatprep.subr.mxu0 0.0
    %707 = vmatpush1.msra.mxu0 %v177
    %708 = vmatprep.subr.mxu0 0.0
    %709 = vmatpush1.msra.mxu0 %v178
    %710 = vmatprep.subr.mxu0 0.0
    %711 = vmatpush1.msra.mxu0 %v179
    %712 = vmatprep.subr.mxu0 0.0
    %713 = vmatpush1.msra.mxu0 %v180
    %714 = vmatprep.subr.mxu0 0.0
    %715 = vmatpush1.msra.mxu0 %v181
    %716 = vmatprep.subr.mxu0 0.0
    %717 = vmatpush1.msra.mxu0 %v182
    %718 = vmatprep.subr.mxu0 0.0
    %719 = vmatpush1.msra.mxu0 %v183
    %720 = vmatprep.subr.mxu0 0.0
    %721 = vmatpush1.msra.mxu0 %v184
    %722 = vmatprep.mubr.f32.mxu0 %v40
    %723 = vmatmul.mubr.f32.gmra.mrb[0].mxu0 %v39
    %v724 = vpop.f32.mrb[0].mxu0
    %v725 = vadd.f32 %v655, %v724
    %v726 = vpop.f32.mrb[0].mxu0
    %727 = vdwg.mxu0
    %728 = vmatprep.subr.mxu0 0.0
    %729 = vmatpush1.msra.mxu0 %v185
    %730 = vmatprep.subr.mxu0 0.0
    %731 = vmatpush1.msra.mxu0 %v186
    %732 = vmatprep.subr.mxu0 0.0
    %733 = vmatpush1.msra.mxu0 %v187
    %734 = vmatprep.subr.mxu0 0.0
    %735 = vmatpush1.msra.mxu0 %v188
    %736 = vmatprep.subr.mxu0 0.0
    %737 = vmatpush1.msra.mxu0 %v189
    %738 = vmatprep.subr.mxu0 0.0
    %739 = vmatpush1.msra.mxu0 %v190
    %740 = vmatprep.subr.mxu0 0.0
    %741 = vmatpush1.msra.mxu0 %v191
    %742 = vmatprep.subr.mxu0 0.0
    %743 = vmatpush1.msra.mxu0 %v192
    %744 = vmatprep.subr.mxu0 0.0
    %745 = vmatpush1.msra.mxu0 %v193
    %746 = vmatprep.subr.mxu0 0.0
    %747 = vmatpush1.msra.mxu0 %v194
    %748 = vmatprep.subr.mxu0 0.0
    %749 = vmatpush1.msra.mxu0 %v195
    %750 = vmatprep.subr.mxu0 0.0
    %751 = vmatpush1.msra.mxu0 %v196
    %752 = vmatprep.subr.mxu0 0.0
    %753 = vmatpush1.msra.mxu0 %v197
    %754 = vmatprep.subr.mxu0 0.0
    %755 = vmatpush1.msra.mxu0 %v198
    %756 = vmatprep.subr.mxu0 0.0
    %757 = vmatpush1.msra.mxu0 %v199
    %758 = vmatprep.subr.mxu0 0.0
    %759 = vmatpush1.msra.mxu0 %v200
    %760 = vmatprep.subr.mxu0 0.0
    %761 = vmatpush1.msra.mxu0 %v201
    %762 = vmatprep.subr.mxu0 0.0
    %763 = vmatpush1.msra.mxu0 %v202
    %764 = vmatprep.subr.mxu0 0.0
    %765 = vmatpush1.msra.mxu0 %v203
    %766 = vmatprep.subr.mxu0 0.0
    %767 = vmatpush1.msra.mxu0 %v204
    %768 = vmatprep.subr.mxu0 0.0
    %769 = vmatpush1.msra.mxu0 %v205
    %770 = vmatprep.subr.mxu0 0.0
    %771 = vmatpush1.msra.mxu0 %v206
    %772 = vmatprep.subr.mxu0 0.0
    %773 = vmatpush1.msra.mxu0 %v207
    %774 = vmatprep.subr.mxu0 0.0
    %775 = vmatpush1.msra.mxu0 %v208
    %776 = vmatprep.subr.mxu0 0.0
    %777 = vmatpush1.msra.mxu0 %v209
    %778 = vmatprep.subr.mxu0 0.0
    %779 = vmatpush1.msra.mxu0 %v210
    %780 = vmatprep.subr.mxu0 0.0
    %781 = vmatpush1.msra.mxu0 %v211
    %782 = vmatprep.subr.mxu0 0.0
    %783 = vmatpush1.msra.mxu0 %v212
    %784 = vmatprep.subr.mxu0 0.0
    %785 = vmatpush1.msra.mxu0 %v213
    %786 = vmatprep.subr.mxu0 0.0
    %787 = vmatpush1.msra.mxu0 %v214
    %788 = vmatprep.subr.mxu0 0.0
    %789 = vmatpush1.msra.mxu0 %v215
    %790 = vmatprep.subr.mxu0 0.0
    %791 = vmatpush1.msra.mxu0 %v216
    %792 = vmatprep.mubr.f32.mxu0 %v42
    %793 = vmatmul.mubr.f32.gmra.mrb[0].mxu0 %v41
    %v794 = vpop.f32.mrb[0].mxu0
    %v795 = vadd.f32 %v725, %v794
    %v796 = vpop.f32.mrb[0].mxu0
    %797 = vdwg.mxu0
    %798 = vmatprep.subr.mxu0 0.0
    %799 = vmatpush1.msra.mxu0 %v217
    %800 = vmatprep.subr.mxu0 0.0
    %801 = vmatpush1.msra.mxu0 %v218
    %802 = vmatprep.subr.mxu0 0.0
    %803 = vmatpush1.msra.mxu0 %v219
    %804 = vmatprep.subr.mxu0 0.0
    %805 = vmatpush1.msra.mxu0 %v220
    %806 = vmatprep.subr.mxu0 0.0
    %807 = vmatpush1.msra.mxu0 %v221
    %808 = vmatprep.subr.mxu0 0.0
    %809 = vmatpush1.msra.mxu0 %v222
    %810 = vmatprep.subr.mxu0 0.0
    %811 = vmatpush1.msra.mxu0 %v223
    %812 = vmatprep.subr.mxu0 0.0
    %813 = vmatpush1.msra.mxu0 %v224
    %814 = vmatprep.subr.mxu0 0.0
    %815 = vmatpush1.msra.mxu0 %v225
    %816 = vmatprep.subr.mxu0 0.0
    %817 = vmatpush1.msra.mxu0 %v226
    %818 = vmatprep.subr.mxu0 0.0
    %819 = vmatpush1.msra.mxu0 %v227
    %820 = vmatprep.subr.mxu0 0.0
    %821 = vmatpush1.msra.mxu0 %v228
    %822 = vmatprep.subr.mxu0 0.0
    %823 = vmatpush1.msra.mxu0 %v229
    %824 = vmatprep.subr.mxu0 0.0
    %825 = vmatpush1.msra.mxu0 %v230
    %826 = vmatprep.subr.mxu0 0.0
    %827 = vmatpush1.msra.mxu0 %v231
    %828 = vmatprep.subr.mxu0 0.0
    %829 = vmatpush1.msra.mxu0 %v232
    %830 = vmatprep.subr.mxu0 0.0
    %831 = vmatpush1.msra.mxu0 %v233
    %832 = vmatprep.subr.mxu0 0.0
    %833 = vmatpush1.msra.mxu0 %v234
    %834 = vmatprep.subr.mxu0 0.0
    %835 = vmatpush1.msra.mxu0 %v235
    %836 = vmatprep.subr.mxu0 0.0
    %837 = vmatpush1.msra.mxu0 %v236
    %838 = vmatprep.subr.mxu0 0.0
    %839 = vmatpush1.msra.mxu0 %v237
    %840 = vmatprep.subr.mxu0 0.0
    %841 = vmatpush1.msra.mxu0 %v238
    %842 = vmatprep.subr.mxu0 0.0
    %843 = vmatpush1.msra.mxu0 %v239
    %844 = vmatprep.subr.mxu0 0.0
    %845 = vmatpush1.msra.mxu0 %v240
    %846 = vmatprep.subr.mxu0 0.0
    %847 = vmatpush1.msra.mxu0 %v241
    %848 = vmatprep.subr.mxu0 0.0
    %849 = vmatpush1.msra.mxu0 %v242
    %850 = vmatprep.subr.mxu0 0.0
    %851 = vmatpush1.msra.mxu0 %v243
    %852 = vmatprep.subr.mxu0 0.0
    %853 = vmatpush1.msra.mxu0 %v244
    %854 = vmatprep.subr.mxu0 0.0
    %855 = vmatpush1.msra.mxu0 %v245
    %856 = vmatprep.subr.mxu0 0.0
    %857 = vmatpush1.msra.mxu0 %v246
    %858 = vmatprep.subr.mxu0 0.0
    %859 = vmatpush1.msra.mxu0 %v247
    %860 = vmatprep.subr.mxu0 0.0
    %861 = vmatpush1.msra.mxu0 %v248
    %862 = vmatprep.mubr.f32.mxu0 %v44
    %863 = vmatmul.mubr.f32.gmra.mrb[0].mxu0 %v43
    %v864 = vpop.f32.mrb[0].mxu0
    %v865 = vadd.f32 %v795, %v864
    %v866 = vpop.f32.mrb[0].mxu0
    %867 = vdwg.mxu0
    %868 = vmatprep.subr.mxu0 0.0
    %869 = vmatpush1.msra.mxu0 %v249
    %870 = vmatprep.subr.mxu0 0.0
    %871 = vmatpush1.msra.mxu0 %v250
    %872 = vmatprep.subr.mxu0 0.0
    %873 = vmatpush1.msra.mxu0 %v251
    %874 = vmatprep.subr.mxu0 0.0
    %875 = vmatpush1.msra.mxu0 %v252
    %876 = vmatprep.subr.mxu0 0.0
    %877 = vmatpush1.msra.mxu0 %v253
    %878 = vmatprep.subr.mxu0 0.0
    %879 = vmatpush1.msra.mxu0 %v254
    %880 = vmatprep.subr.mxu0 0.0
    %881 = vmatpush1.msra.mxu0 %v255
    %882 = vmatprep.subr.mxu0 0.0
    %883 = vmatpush1.msra.mxu0 %v256
    %884 = vmatprep.subr.mxu0 0.0
    %885 = vmatpush1.msra.mxu0 %v257
    %886 = vmatprep.subr.mxu0 0.0
    %887 = vmatpush1.msra.mxu0 %v258
    %888 = vmatprep.subr.mxu0 0.0
    %889 = vmatpush1.msra.mxu0 %v259
    %890 = vmatprep.subr.mxu0 0.0
    %891 = vmatpush1.msra.mxu0 %v260
    %892 = vmatprep.subr.mxu0 0.0
    %893 = vmatpush1.msra.mxu0 %v261
    %894 = vmatprep.subr.mxu0 0.0
    %895 = vmatpush1.msra.mxu0 %v262
    %896 = vmatprep.subr.mxu0 0.0
    %897 = vmatpush1.msra.mxu0 %v263
    %898 = vmatprep.subr.mxu0 0.0
    %899 = vmatpush1.msra.mxu0 %v264
    %900 = vmatprep.subr.mxu0 0.0
    %901 = vmatpush1.msra.mxu0 %v265
    %902 = vmatprep.subr.mxu0 0.0
    %903 = vmatpush1.msra.mxu0 %v266
    %904 = vmatprep.subr.mxu0 0.0
    %905 = vmatpush1.msra.mxu0 %v267
    %906 = vmatprep.subr.mxu0 0.0
    %907 = vmatpush1.msra.mxu0 %v268
    %908 = vmatprep.subr.mxu0 0.0
    %909 = vmatpush1.msra.mxu0 %v269
    %910 = vmatprep.subr.mxu0 0.0
    %911 = vmatpush1.msra.mxu0 %v270
    %912 = vmatprep.subr.mxu0 0.0
    %913 = vmatpush1.msra.mxu0 %v271
    %914 = vmatprep.subr.mxu0 0.0
    %915 = vmatpush1.msra.mxu0 %v272
    %916 = vmatprep.subr.mxu0 0.0
    %917 = vmatpush1.msra.mxu0 %v273
    %918 = vmatprep.subr.mxu0 0.0
    %919 = vmatpush1.msra.mxu0 %v274
    %920 = vmatprep.subr.mxu0 0.0
    %921 = vmatpush1.msra.mxu0 %v275
    %922 = vmatprep.subr.mxu0 0.0
    %923 = vmatpush1.msra.mxu0 %v276
    %924 = vmatprep.subr.mxu0 0.0
    %925 = vmatpush1.msra.mxu0 %v277
    %926 = vmatprep.subr.mxu0 0.0
    %927 = vmatpush1.msra.mxu0 %v278
    %928 = vmatprep.subr.mxu0 0.0
    %929 = vmatpush1.msra.mxu0 %v279
    %930 = vmatprep.subr.mxu0 0.0
    %931 = vmatpush1.msra.mxu0 %v280
    %932 = vmatprep.mubr.f32.mxu0 %v46
    %933 = vmatmul.mubr.f32.gmra.mrb[0].mxu0 %v45
    %v934 = vpop.f32.mrb[0].mxu0
    %v935 = vadd.f32 %v865, %v934
    %v936 = vpop.f32.mrb[0].mxu0
    %937 = vdwg.mxu0
    %938 = vmatprep.subr.mxu0 0.0
    %939 = vmatpush1.msra.mxu0 %v281
    %940 = vmatprep.subr.mxu0 0.0
    %941 = vmatpush1.msra.mxu0 %v282
    %942 = vmatprep.subr.mxu0 0.0
    %943 = vmatpush1.msra.mxu0 %v283
    %944 = vmatprep.subr.mxu0 0.0
    %945 = vmatpush1.msra.mxu0 %v284
    %946 = vmatprep.subr.mxu0 0.0
    %947 = vmatpush1.msra.mxu0 %v285
    %948 = vmatprep.subr.mxu0 0.0
    %949 = vmatpush1.msra.mxu0 %v286
    %950 = vmatprep.subr.mxu0 0.0
    %951 = vmatpush1.msra.mxu0 %v287
    %952 = vmatprep.subr.mxu0 0.0
    %953 = vmatpush1.msra.mxu0 %v288
    %954 = vmatprep.subr.mxu0 0.0
    %955 = vmatpush1.msra.mxu0 %v289
    %956 = vmatprep.subr.mxu0 0.0
    %957 = vmatpush1.msra.mxu0 %v290
    %958 = vmatprep.subr.mxu0 0.0
    %959 = vmatpush1.msra.mxu0 %v291
    %960 = vmatprep.subr.mxu0 0.0
    %961 = vmatpush1.msra.mxu0 %v292
    %962 = vmatprep.subr.mxu0 0.0
    %963 = vmatpush1.msra.mxu0 %v293
    %964 = vmatprep.subr.mxu0 0.0
    %965 = vmatpush1.msra.mxu0 %v294
    %966 = vmatprep.subr.mxu0 0.0
    %967 = vmatpush1.msra.mxu0 %v295
    %968 = vmatprep.subr.mxu0 0.0
    %969 = vmatpush1.msra.mxu0 %v296
    %970 = vmatprep.subr.mxu0 0.0
    %971 = vmatpush1.msra.mxu0 %v297
    %972 = vmatprep.subr.mxu0 0.0
    %973 = vmatpush1.msra.mxu0 %v298
    %974 = vmatprep.subr.mxu0 0.0
    %975 = vmatpush1.msra.mxu0 %v299
    %976 = vmatprep.subr.mxu0 0.0
    %977 = vmatpush1.msra.mxu0 %v300
    %978 = vmatprep.subr.mxu0 0.0
    %979 = vmatpush1.msra.mxu0 %v301
    %980 = vmatprep.subr.mxu0 0.0
    %981 = vmatpush1.msra.mxu0 %v302
    %982 = vmatprep.subr.mxu0 0.0
    %983 = vmatpush1.msra.mxu0 %v303
    %984 = vmatprep.subr.mxu0 0.0
    %985 = vmatpush1.msra.mxu0 %v304
    %986 = vmatprep.subr.mxu0 0.0
    %987 = vmatpush1.msra.mxu0 %v305
    %988 = vmatprep.subr.mxu0 0.0
    %989 = vmatpush1.msra.mxu0 %v306
    %990 = vmatprep.subr.mxu0 0.0
    %991 = vmatpush1.msra.mxu0 %v307
    %992 = vmatprep.subr.mxu0 0.0
    %993 = vmatpush1.msra.mxu0 %v308
    %994 = vmatprep.subr.mxu0 0.0
    %995 = vmatpush1.msra.mxu0 %v309
    %996 = vmatprep.subr.mxu0 0.0
    %997 = vmatpush1.msra.mxu0 %v310
    %998 = vmatprep.subr.mxu0 0.0
    %999 = vmatpush1.msra.mxu0 %v311
    %1000 = vmatprep.subr.mxu0 0.0
    %1001 = vmatpush1.msra.mxu0 %v312
    %1002 = vmatprep.mubr.f32.mxu0 %v48
    %1003 = vmatmul.mubr.f32.gmra.mrb[0].mxu0 %v47
    %v1004 = vpop.f32.mrb[0].mxu0
    %v1005 = vadd.f32 %v935, %v1004
    %v1006 = vpop.f32.mrb[0].mxu0
    %1007 = vdwg.mxu0
    %1008 = vmatprep.subr.mxu0 0.0
    %1009 = vmatpush1.msra.mxu0 %v313
    %1010 = vmatprep.subr.mxu0 0.0
    %1011 = vmatpush1.msra.mxu0 %v314
    %1012 = vmatprep.subr.mxu0 0.0
    %1013 = vmatpush1.msra.mxu0 %v315
    %1014 = vmatprep.subr.mxu0 0.0
    %1015 = vmatpush1.msra.mxu0 %v316
    %1016 = vmatprep.subr.mxu0 0.0
    %1017 = vmatpush1.msra.mxu0 %v317
    %1018 = vmatprep.subr.mxu0 0.0
    %1019 = vmatpush1.msra.mxu0 %v318
    %1020 = vmatprep.subr.mxu0 0.0
    %1021 = vmatpush1.msra.mxu0 %v319
    %1022 = vmatprep.subr.mxu0 0.0
    %1023 = vmatpush1.msra.mxu0 %v320
    %1024 = vmatprep.subr.mxu0 0.0
    %1025 = vmatpush1.msra.mxu0 %v321
    %1026 = vmatprep.subr.mxu0 0.0
    %1027 = vmatpush1.msra.mxu0 %v322
    %1028 = vmatprep.subr.mxu0 0.0
    %1029 = vmatpush1.msra.mxu0 %v323
    %1030 = vmatprep.subr.mxu0 0.0
    %1031 = vmatpush1.msra.mxu0 %v324
    %1032 = vmatprep.subr.mxu0 0.0
    %1033 = vmatpush1.msra.mxu0 %v325
    %1034 = vmatprep.subr.mxu0 0.0
    %1035 = vmatpush1.msra.mxu0 %v326
    %1036 = vmatprep.subr.mxu0 0.0
    %1037 = vmatpush1.msra.mxu0 %v327
    %1038 = vmatprep.subr.mxu0 0.0
    %1039 = vmatpush1.msra.mxu0 %v328
    %1040 = vmatprep.subr.mxu0 0.0
    %1041 = vmatpush1.msra.mxu0 %v329
    %1042 = vmatprep.subr.mxu0 0.0
    %1043 = vmatpush1.msra.mxu0 %v330
    %1044 = vmatprep.subr.mxu0 0.0
    %1045 = vmatpush1.msra.mxu0 %v331
    %1046 = vmatprep.subr.mxu0 0.0
    %1047 = vmatpush1.msra.mxu0 %v332
    %1048 = vmatprep.subr.mxu0 0.0
    %1049 = vmatpush1.msra.mxu0 %v333
    %1050 = vmatprep.subr.mxu0 0.0
    %1051 = vmatpush1.msra.mxu0 %v334
    %1052 = vmatprep.subr.mxu0 0.0
    %1053 = vmatpush1.msra.mxu0 %v335
    %1054 = vmatprep.subr.mxu0 0.0
    %1055 = vmatpush1.msra.mxu0 %v336
    %1056 = vmatprep.subr.mxu0 0.0
    %1057 = vmatpush1.msra.mxu0 %v337
    %1058 = vmatprep.subr.mxu0 0.0
    %1059 = vmatpush1.msra.mxu0 %v338
    %1060 = vmatprep.subr.mxu0 0.0
    %1061 = vmatpush1.msra.mxu0 %v339
    %1062 = vmatprep.subr.mxu0 0.0
    %1063 = vmatpush1.msra.mxu0 %v340
    %1064 = vmatprep.subr.mxu0 0.0
    %1065 = vmatpush1.msra.mxu0 %v341
    %1066 = vmatprep.subr.mxu0 0.0
    %1067 = vmatpush1.msra.mxu0 %v342
    %1068 = vmatprep.subr.mxu0 0.0
    %1069 = vmatpush1.msra.mxu0 %v343
    %1070 = vmatprep.subr.mxu0 0.0
    %1071 = vmatpush1.msra.mxu0 %v344
    %1072 = vmatprep.mubr.f32.mxu0 %v50
    %1073 = vmatmul.mubr.f32.gmra.mrb[0].mxu0 %v49
    %v1074 = vpop.f32.mrb[0].mxu0
    %v1075 = vadd.f32 %v1005, %v1074
    %v1076 = vpop.f32.mrb[0].mxu0
    %1077 = vdwg.mxu0
    %1078 = vmatprep.subr.mxu0 0.0
    %1079 = vmatpush1.msra.mxu0 %v345
    %1080 = vmatprep.subr.mxu0 0.0
    %1081 = vmatpush1.msra.mxu0 %v346
    %1082 = vmatprep.subr.mxu0 0.0
    %1083 = vmatpush1.msra.mxu0 %v347
    %1084 = vmatprep.subr.mxu0 0.0
    %1085 = vmatpush1.msra.mxu0 %v348
    %1086 = vmatprep.subr.mxu0 0.0
    %1087 = vmatpush1.msra.mxu0 %v349
    %1088 = vmatprep.subr.mxu0 0.0
    %1089 = vmatpush1.msra.mxu0 %v350
    %1090 = vmatprep.subr.mxu0 0.0
    %1091 = vmatpush1.msra.mxu0 %v351
    %1092 = vmatprep.subr.mxu0 0.0
    %1093 = vmatpush1.msra.mxu0 %v352
    %1094 = vmatprep.subr.mxu0 0.0
    %1095 = vmatpush1.msra.mxu0 %v353
    %1096 = vmatprep.subr.mxu0 0.0
    %1097 = vmatpush1.msra.mxu0 %v354
    %1098 = vmatprep.subr.mxu0 0.0
    %1099 = vmatpush1.msra.mxu0 %v355
    %1100 = vmatprep.subr.mxu0 0.0
    %1101 = vmatpush1.msra.mxu0 %v356
    %1102 = vmatprep.subr.mxu0 0.0
    %1103 = vmatpush1.msra.mxu0 %v357
    %1104 = vmatprep.subr.mxu0 0.0
    %1105 = vmatpush1.msra.mxu0 %v358
    %1106 = vmatprep.subr.mxu0 0.0
    %1107 = vmatpush1.msra.mxu0 %v359
    %1108 = vmatprep.subr.mxu0 0.0
    %1109 = vmatpush1.msra.mxu0 %v360
    %1110 = vmatprep.subr.mxu0 0.0
    %1111 = vmatpush1.msra.mxu0 %v361
    %1112 = vmatprep.subr.mxu0 0.0
    %1113 = vmatpush1.msra.mxu0 %v362
    %1114 = vmatprep.subr.mxu0 0.0
    %1115 = vmatpush1.msra.mxu0 %v363
    %1116 = vmatprep.subr.mxu0 0.0
    %1117 = vmatpush1.msra.mxu0 %v364
    %1118 = vmatprep.subr.mxu0 0.0
    %1119 = vmatpush1.msra.mxu0 %v365
    %1120 = vmatprep.subr.mxu0 0.0
    %1121 = vmatpush1.msra.mxu0 %v366
    %1122 = vmatprep.subr.mxu0 0.0
    %1123 = vmatpush1.msra.mxu0 %v367
    %1124 = vmatprep.subr.mxu0 0.0
    %1125 = vmatpush1.msra.mxu0 %v368
    %1126 = vmatprep.subr.mxu0 0.0
    %1127 = vmatpush1.msra.mxu0 %v369
    %1128 = vmatprep.subr.mxu0 0.0
    %1129 = vmatpush1.msra.mxu0 %v370
    %1130 = vmatprep.subr.mxu0 0.0
    %1131 = vmatpush1.msra.mxu0 %v371
    %1132 = vmatprep.subr.mxu0 0.0
    %1133 = vmatpush1.msra.mxu0 %v372
    %1134 = vmatprep.subr.mxu0 0.0
    %1135 = vmatpush1.msra.mxu0 %v373
    %1136 = vmatprep.subr.mxu0 0.0
    %1137 = vmatpush1.msra.mxu0 %v374
    %1138 = vmatprep.subr.mxu0 0.0
    %1139 = vmatpush1.msra.mxu0 %v375
    %1140 = vmatprep.subr.mxu0 0.0
    %1141 = vmatpush1.msra.mxu0 %v376
    %1142 = vmatprep.mubr.f32.mxu0 %v52
    %1143 = vmatmul.mubr.f32.gmra.mrb[0].mxu0 %v51
    %v1144 = vpop.f32.mrb[0].mxu0
    %v1145 = vadd.f32 %v1075, %v1144
    %v1146 = vpop.f32.mrb[0].mxu0
    %1147 = vdwg.mxu0
    %1148 = vmatprep.subr.mxu0 0.0
    %1149 = vmatpush1.msra.mxu0 %v377
    %1150 = vmatprep.subr.mxu0 0.0
    %1151 = vmatpush1.msra.mxu0 %v378
    %1152 = vmatprep.subr.mxu0 0.0
    %1153 = vmatpush1.msra.mxu0 %v379
    %1154 = vmatprep.subr.mxu0 0.0
    %1155 = vmatpush1.msra.mxu0 %v380
    %1156 = vmatprep.subr.mxu0 0.0
    %1157 = vmatpush1.msra.mxu0 %v381
    %1158 = vmatprep.subr.mxu0 0.0
    %1159 = vmatpush1.msra.mxu0 %v382
    %1160 = vmatprep.subr.mxu0 0.0
    %1161 = vmatpush1.msra.mxu0 %v383
    %1162 = vmatprep.subr.mxu0 0.0
    %1163 = vmatpush1.msra.mxu0 %v384
    %1164 = vmatprep.subr.mxu0 0.0
    %1165 = vmatpush1.msra.mxu0 %v385
    %1166 = vmatprep.subr.mxu0 0.0
    %1167 = vmatpush1.msra.mxu0 %v386
    %1168 = vmatprep.subr.mxu0 0.0
    %1169 = vmatpush1.msra.mxu0 %v387
    %1170 = vmatprep.subr.mxu0 0.0
    %1171 = vmatpush1.msra.mxu0 %v388
    %1172 = vmatprep.subr.mxu0 0.0
    %1173 = vmatpush1.msra.mxu0 %v389
    %1174 = vmatprep.subr.mxu0 0.0
    %1175 = vmatpush1.msra.mxu0 %v390
    %1176 = vmatprep.subr.mxu0 0.0
    %1177 = vmatpush1.msra.mxu0 %v391
    %1178 = vmatprep.subr.mxu0 0.0
    %1179 = vmatpush1.msra.mxu0 %v392
    %1180 = vmatprep.subr.mxu0 0.0
    %1181 = vmatpush1.msra.mxu0 %v393
    %1182 = vmatprep.subr.mxu0 0.0
    %1183 = vmatpush1.msra.mxu0 %v394
    %1184 = vmatprep.subr.mxu0 0.0
    %1185 = vmatpush1.msra.mxu0 %v395
    %1186 = vmatprep.subr.mxu0 0.0
    %1187 = vmatpush1.msra.mxu0 %v396
    %1188 = vmatprep.subr.mxu0 0.0
    %1189 = vmatpush1.msra.mxu0 %v397
    %1190 = vmatprep.subr.mxu0 0.0
    %1191 = vmatpush1.msra.mxu0 %v398
    %1192 = vmatprep.subr.mxu0 0.0
    %1193 = vmatpush1.msra.mxu0 %v399
    %1194 = vmatprep.subr.mxu0 0.0
    %1195 = vmatpush1.msra.mxu0 %v400
    %1196 = vmatprep.subr.mxu0 0.0
    %1197 = vmatpush1.msra.mxu0 %v401
    %1198 = vmatprep.subr.mxu0 0.0
    %1199 = vmatpush1.msra.mxu0 %v402
    %1200 = vmatprep.subr.mxu0 0.0
    %1201 = vmatpush1.msra.mxu0 %v403
    %1202 = vmatprep.subr.mxu0 0.0
    %1203 = vmatpush1.msra.mxu0 %v404
    %1204 = vmatprep.subr.mxu0 0.0
    %1205 = vmatpush1.msra.mxu0 %v405
    %1206 = vmatprep.subr.mxu0 0.0
    %1207 = vmatpush1.msra.mxu0 %v406
    %1208 = vmatprep.subr.mxu0 0.0
    %1209 = vmatpush1.msra.mxu0 %v407
    %1210 = vmatprep.subr.mxu0 0.0
    %1211 = vmatpush1.msra.mxu0 %v408
    %1212 = vmatprep.mubr.f32.mxu0 %v54
    %1213 = vmatmul.mubr.f32.gmra.mrb[0].mxu0 %v53
    %v1214 = vpop.f32.mrb[0].mxu0
    %v1215 = vadd.f32 %v1145, %v1214
    %v1216 = vpop.f32.mrb[0].mxu0
    %1217 = vdwg.mxu0
    %1218 = vmatprep.subr.mxu0 0.0
    %1219 = vmatpush1.msra.mxu0 %v409
    %1220 = vmatprep.subr.mxu0 0.0
    %1221 = vmatpush1.msra.mxu0 %v410
    %1222 = vmatprep.subr.mxu0 0.0
    %1223 = vmatpush1.msra.mxu0 %v411
    %1224 = vmatprep.subr.mxu0 0.0
    %1225 = vmatpush1.msra.mxu0 %v412
    %1226 = vmatprep.subr.mxu0 0.0
    %1227 = vmatpush1.msra.mxu0 %v413
    %1228 = vmatprep.subr.mxu0 0.0
    %1229 = vmatpush1.msra.mxu0 %v414
    %1230 = vmatprep.subr.mxu0 0.0
    %1231 = vmatpush1.msra.mxu0 %v415
    %1232 = vmatprep.subr.mxu0 0.0
    %1233 = vmatpush1.msra.mxu0 %v416
    %1234 = vmatprep.subr.mxu0 0.0
    %1235 = vmatpush1.msra.mxu0 %v417
    %1236 = vmatprep.subr.mxu0 0.0
    %1237 = vmatpush1.msra.mxu0 %v418
    %1238 = vmatprep.subr.mxu0 0.0
    %1239 = vmatpush1.msra.mxu0 %v419
    %1240 = vmatprep.subr.mxu0 0.0
    %1241 = vmatpush1.msra.mxu0 %v420
    %1242 = vmatprep.subr.mxu0 0.0
    %1243 = vmatpush1.msra.mxu0 %v421
    %1244 = vmatprep.subr.mxu0 0.0
    %1245 = vmatpush1.msra.mxu0 %v422
    %1246 = vmatprep.subr.mxu0 0.0
    %1247 = vmatpush1.msra.mxu0 %v423
    %1248 = vmatprep.subr.mxu0 0.0
    %1249 = vmatpush1.msra.mxu0 %v424
    %1250 = vmatprep.subr.mxu0 0.0
    %1251 = vmatpush1.msra.mxu0 %v425
    %1252 = vmatprep.subr.mxu0 0.0
    %1253 = vmatpush1.msra.mxu0 %v426
    %1254 = vmatprep.subr.mxu0 0.0
    %1255 = vmatpush1.msra.mxu0 %v427
    %1256 = vmatprep.subr.mxu0 0.0
    %1257 = vmatpush1.msra.mxu0 %v428
    %1258 = vmatprep.subr.mxu0 0.0
    %1259 = vmatpush1.msra.mxu0 %v429
    %1260 = vmatprep.subr.mxu0 0.0
    %1261 = vmatpush1.msra.mxu0 %v430
    %1262 = vmatprep.subr.mxu0 0.0
    %1263 = vmatpush1.msra.mxu0 %v431
    %1264 = vmatprep.subr.mxu0 0.0
    %1265 = vmatpush1.msra.mxu0 %v432
    %1266 = vmatprep.subr.mxu0 0.0
    %1267 = vmatpush1.msra.mxu0 %v433
    %1268 = vmatprep.subr.mxu0 0.0
    %1269 = vmatpush1.msra.mxu0 %v434
    %1270 = vmatprep.subr.mxu0 0.0
    %1271 = vmatpush1.msra.mxu0 %v435
    %1272 = vmatprep.subr.mxu0 0.0
    %1273 = vmatpush1.msra.mxu0 %v436
    %1274 = vmatprep.subr.mxu0 0.0
    %1275 = vmatpush1.msra.mxu0 %v437
    %1276 = vmatprep.subr.mxu0 0.0
    %1277 = vmatpush1.msra.mxu0 %v438
    %1278 = vmatprep.subr.mxu0 0.0
    %1279 = vmatpush1.msra.mxu0 %v439
    %1280 = vmatprep.subr.mxu0 0.0
    %1281 = vmatpush1.msra.mxu0 %v440
    %1282 = vmatprep.mubr.f32.mxu0 %v56
    %1283 = vmatmul.mubr.f32.gmra.mrb[0].mxu0 %v55
    %v1284 = vpop.f32.mrb[0].mxu0
    %v1285 = vadd.f32 %v1215, %v1284
    %v1286 = vpop.f32.mrb[0].mxu0
    %1287 = vdwg.mxu0
    %v1288 = vmax.f32 %v1285, 0.0
    %v1289 = vld [vmem:[%s3] sm:$0xff]
    %v1290 = vld [vmem:[%s3 + $0x8] sm:$0xff]
    %v1291 = vld [vmem:[%s3 + $0x10] sm:$0xff]
    %v1292 = vld [vmem:[%s3 + $0x18] sm:$0xff]
    %v1293 = vld [vmem:[%s3 + $0x20] sm:$0xff]
    %v1294 = vld [vmem:[%s3 + $0x28] sm:$0xff]
    %v1295 = vld [vmem:[%s3 + $0x30] sm:$0xff]
    %v1296 = vld [vmem:[%s3 + $0x38] sm:$0xff]
    %v1297 = vld [vmem:[%s4] sm:$0x1]
    %v1299 = vlaneseq
    %v1300 = vshrl.u32 %v1299, 7
    %v1301 = vsub.s32 0, %v1300
    %v1302 = vrot.slane %v1297, %v1301
    %vm1304 = vcmask 523264
    %v1306 = vsel %vm1304, %v1288, 0
    %1308 = vmatprep.subr.mxu0 0.0
    %1309 = vmatpush1.msra.mxu0 %v1289
    %1310 = vmatprep.subr.mxu0 0.0
    %1311 = vmatpush1.msra.mxu0 %v1290
    %1312 = vmatprep.subr.mxu0 0.0
    %1313 = vmatpush1.msra.mxu0 %v1291
    %1314 = vmatprep.subr.mxu0 0.0
    %1315 = vmatpush1.msra.mxu0 %v1292
    %1316 = vmatprep.subr.mxu0 0.0
    %1317 = vmatpush1.msra.mxu0 %v1293
    %1318 = vmatprep.subr.mxu0 0.0
    %1319 = vmatpush1.msra.mxu0 %v1294
    %1320 = vmatprep.subr.mxu0 0.0
    %1321 = vmatpush1.msra.mxu0 %v1295
    %1322 = vmatprep.subr.mxu0 0.0
    %1323 = vmatpush1.msra.mxu0 %v1296
    %1324 = vmatprep.subr.mxu0 0.0
    %1325 = vmatpush1.msra.mxu0 0.0
    %1326 = vmatprep.subr.mxu0 0.0
    %1327 = vmatpush1.msra.mxu0 0.0
    %1328 = vmatprep.subr.mxu0 0.0
    %1329 = vmatpush1.msra.mxu0 0.0
    %1330 = vmatprep.subr.mxu0 0.0
    %1331 = vmatpush1.msra.mxu0 0.0
    %1332 = vmatprep.subr.mxu0 0.0
    %1333 = vmatpush1.msra.mxu0 0.0
    %1334 = vmatprep.subr.mxu0 0.0
    %1335 = vmatpush1.msra.mxu0 0.0
    %1336 = vmatprep.subr.mxu0 0.0
    %1337 = vmatpush1.msra.mxu0 0.0
    %1338 = vmatprep.subr.mxu0 0.0
    %1339 = vmatpush1.msra.mxu0 0.0
    %1340 = vmatprep.subr.mxu0 0.0
    %1341 = vmatpush1.msra.mxu0 0.0
    %1342 = vmatprep.subr.mxu0 0.0
    %1343 = vmatpush1.msra.mxu0 0.0
    %1344 = vmatprep.subr.mxu0 0.0
    %1345 = vmatpush1.msra.mxu0 0.0
    %1346 = vmatprep.subr.mxu0 0.0
    %1347 = vmatpush1.msra.mxu0 0.0
    %1348 = vmatprep.subr.mxu0 0.0
    %1349 = vmatpush1.msra.mxu0 0.0
    %1350 = vmatprep.subr.mxu0 0.0
    %1351 = vmatpush1.msra.mxu0 0.0
    %1352 = vmatprep.subr.mxu0 0.0
    %1353 = vmatpush1.msra.mxu0 0.0
    %1354 = vmatprep.subr.mxu0 0.0
    %1355 = vmatpush1.msra.mxu0 0.0
    %1356 = vmatprep.subr.mxu0 0.0
    %1357 = vmatpush1.msra.mxu0 0.0
    %1358 = vmatprep.subr.mxu0 0.0
    %1359 = vmatpush1.msra.mxu0 0.0
    %1360 = vmatprep.subr.mxu0 0.0
    %1361 = vmatpush1.msra.mxu0 0.0
    %1362 = vmatprep.subr.mxu0 0.0
    %1363 = vmatpush1.msra.mxu0 0.0
    %1364 = vmatprep.subr.mxu0 0.0
    %1365 = vmatpush1.msra.mxu0 0.0
    %1366 = vmatprep.subr.mxu0 0.0
    %1367 = vmatpush1.msra.mxu0 0.0
    %1368 = vmatprep.subr.mxu0 0.0
    %1369 = vmatpush1.msra.mxu0 0.0
    %1370 = vmatprep.subr.mxu0 0.0
    %1371 = vmatpush1.msra.mxu0 0.0
    %1372 = vmatprep.mubr.f32.mxu0 0.0
    %1373 = vmatmul.mubr.f32.gmra.mrb[0].mxu0 %v1306
    %v1374 = vpop.f32.mrb[0].mxu0
    %v1375 = vadd.f32 %v1302, %v1374
    %v1376 = vpop.f32.mrb[0].mxu0
    %1377 = vdwg.mxu0
    %v1378 = vmax.f32 %v1375, 0.0
    %v1379 = vld [vmem:[%s5] sm:$0xff]
    %v1380 = vld [vmem:[%s5 + $0x8] sm:$0xff]
    %v1381 = vld [vmem:[%s5 + $0x10] sm:$0xff]
    %v1382 = vld [vmem:[%s5 + $0x18] sm:$0xff]
    %v1383 = vld [vmem:[%s5 + $0x20] sm:$0xff]
    %v1384 = vld [vmem:[%s5 + $0x28] sm:$0xff]
    %v1385 = vld [vmem:[%s5 + $0x30] sm:$0xff]
    %v1386 = vld [vmem:[%s5 + $0x38] sm:$0xff]
    %v1387 = vld [vmem:[%s5 + $0x40] sm:$0xff]
    %v1388 = vld [vmem:[%s5 + $0x48] sm:$0xff]
    %v1389 = vld [vmem:[%s5 + $0x50] sm:$0xff]
    %v1390 = vld [vmem:[%s5 + $0x58] sm:$0xff]
    %v1391 = vld [vmem:[%s5 + $0x60] sm:$0xff]
    %v1392 = vld [vmem:[%s5 + $0x68] sm:$0xff]
    %v1393 = vld [vmem:[%s5 + $0x70] sm:$0xff]
    %v1394 = vld [vmem:[%s5 + $0x78] sm:$0xff]
    %v1395 = vld [vmem:[%s6] sm:$0x1]
    %v1397 = vlaneseq
    %v1398 = vshrl.u32 %v1397, 7
    %v1399 = vsub.s32 0, %v1398
    %v1400 = vrot.slane %v1395, %v1399
    %1402 = vmatprep.subr.mxu0 0.0
    %1403 = vmatpush1.msra.mxu0 %v1379
    %1404 = vmatprep.subr.mxu0 0.0
    %1405 = vmatpush1.msra.mxu0 %v1380
    %1406 = vmatprep.subr.mxu0 0.0
    %1407 = vmatpush1.msra.mxu0 %v1381
    %1408 = vmatprep.subr.mxu0 0.0
    %1409 = vmatpush1.msra.mxu0 %v1382
    %1410 = vmatprep.subr.mxu0 0.0
    %1411 = vmatpush1.msra.mxu0 %v1383
    %1412 = vmatprep.subr.mxu0 0.0
    %1413 = vmatpush1.msra.mxu0 %v1384
    %1414 = vmatprep.subr.mxu0 0.0
    %1415 = vmatpush1.msra.mxu0 %v1385
    %1416 = vmatprep.subr.mxu0 0.0
    %1417 = vmatpush1.msra.mxu0 %v1386
    %1418 = vmatprep.subr.mxu0 0.0
    %1419 = vmatpush1.msra.mxu0 %v1387
    %1420 = vmatprep.subr.mxu0 0.0
    %1421 = vmatpush1.msra.mxu0 %v1388
    %1422 = vmatprep.subr.mxu0 0.0
    %1423 = vmatpush1.msra.mxu0 %v1389
    %1424 = vmatprep.subr.mxu0 0.0
    %1425 = vmatpush1.msra.mxu0 %v1390
    %1426 = vmatprep.subr.mxu0 0.0
    %1427 = vmatpush1.msra.mxu0 %v1391
    %1428 = vmatprep.subr.mxu0 0.0
    %1429 = vmatpush1.msra.mxu0 %v1392
    %1430 = vmatprep.subr.mxu0 0.0
    %1431 = vmatpush1.msra.mxu0 %v1393
    %1432 = vmatprep.subr.mxu0 0.0
    %1433 = vmatpush1.msra.mxu0 %v1394
    %1434 = vmatprep.subr.mxu0 0.0
    %1435 = vmatpush1.msra.mxu0 0.0
    %1436 = vmatprep.subr.mxu0 0.0
    %1437 = vmatpush1.msra.mxu0 0.0
    %1438 = vmatprep.subr.mxu0 0.0
    %1439 = vmatpush1.msra.mxu0 0.0
    %1440 = vmatprep.subr.mxu0 0.0
    %1441 = vmatpush1.msra.mxu0 0.0
    %1442 = vmatprep.subr.mxu0 0.0
    %1443 = vmatpush1.msra.mxu0 0.0
    %1444 = vmatprep.subr.mxu0 0.0
    %1445 = vmatpush1.msra.mxu0 0.0
    %1446 = vmatprep.subr.mxu0 0.0
    %1447 = vmatpush1.msra.mxu0 0.0
    %1448 = vmatprep.subr.mxu0 0.0
    %1449 = vmatpush1.msra.mxu0 0.0
    %1450 = vmatprep.subr.mxu0 0.0
    %1451 = vmatpush1.msra.mxu0 0.0
    %1452 = vmatprep.subr.mxu0 0.0
    %1453 = vmatpush1.msra.mxu0 0.0
    %1454 = vmatprep.subr.mxu0 0.0
    %1455 = vmatpush1.msra.mxu0 0.0
    %1456 = vmatprep.subr.mxu0 0.0
    %1457 = vmatpush1.msra.mxu0 0.0
    %1458 = vmatprep.subr.mxu0 0.0
    %1459 = vmatpush1.msra.mxu0 0.0
    %1460 = vmatprep.subr.mxu0 0.0
    %1461 = vmatpush1.msra.mxu0 0.0
    %1462 = vmatprep.subr.mxu0 0.0
    %1463 = vmatpush1.msra.mxu0 0.0
    %1464 = vmatprep.subr.mxu0 0.0
    %1465 = vmatpush1.msra.mxu0 0.0
    %1466 = vmatprep.mubr.f32.mxu0 0.0
    %1467 = vmatmul.mubr.f32.gmra.mrb[0].mxu0 %v1378
    %v1468 = vpop.f32.mrb[0].mxu0
    %v1469 = vadd.f32 %v1400, %v1468
    %v1470 = vpop.f32.mrb[0].mxu0
    %1471 = vdwg.mxu0
    %v1472 = vmax.f32 %v1469, 0.0
    %v1473 = vld [vmem:[%s7] sm:$0xff]
    %v1474 = vld [vmem:[%s7 + $0x8] sm:$0xff]
    %v1475 = vld [vmem:[%s7 + $0x10] sm:$0xff]
    %v1476 = vld [vmem:[%s7 + $0x18] sm:$0xff]
    %v1477 = vld [vmem:[%s7 + $0x20] sm:$0xff]
    %v1478 = vld [vmem:[%s7 + $0x28] sm:$0xff]
    %v1479 = vld [vmem:[%s7 + $0x30] sm:$0xff]
    %v1480 = vld [vmem:[%s7 + $0x38] sm:$0xff]
    %v1481 = vld [vmem:[%s8] sm:$0x1]
    %v1483 = vlaneseq
    %v1484 = vshrl.u32 %v1483, 7
    %v1485 = vsub.s32 0, %v1484
    %v1486 = vrot.slane %v1481, %v1485
    %v1489 = vsel %vm1304, %v1472, 0
    %1491 = vmatprep.subr.mxu0 0.0
    %1492 = vmatpush1.msra.mxu0 %v1473
    %1493 = vmatprep.subr.mxu0 0.0
    %1494 = vmatpush1.msra.mxu0 %v1474
    %1495 = vmatprep.subr.mxu0 0.0
    %1496 = vmatpush1.msra.mxu0 %v1475
    %1497 = vmatprep.subr.mxu0 0.0
    %1498 = vmatpush1.msra.mxu0 %v1476
    %1499 = vmatprep.subr.mxu0 0.0
    %1500 = vmatpush1.msra.mxu0 %v1477
    %1501 = vmatprep.subr.mxu0 0.0
    %1502 = vmatpush1.msra.mxu0 %v1478
    %1503 = vmatprep.subr.mxu0 0.0
    %1504 = vmatpush1.msra.mxu0 %v1479
    %1505 = vmatprep.subr.mxu0 0.0
    %1506 = vmatpush1.msra.mxu0 %v1480
    %1507 = vmatprep.subr.mxu0 0.0
    %1508 = vmatpush1.msra.mxu0 0.0
    %1509 = vmatprep.subr.mxu0 0.0
    %1510 = vmatpush1.msra.mxu0 0.0
    %1511 = vmatprep.subr.mxu0 0.0
    %1512 = vmatpush1.msra.mxu0 0.0
    %1513 = vmatprep.subr.mxu0 0.0
    %1514 = vmatpush1.msra.mxu0 0.0
    %1515 = vmatprep.subr.mxu0 0.0
    %1516 = vmatpush1.msra.mxu0 0.0
    %1517 = vmatprep.subr.mxu0 0.0
    %1518 = vmatpush1.msra.mxu0 0.0
    %1519 = vmatprep.subr.mxu0 0.0
    %1520 = vmatpush1.msra.mxu0 0.0
    %1521 = vmatprep.subr.mxu0 0.0
    %1522 = vmatpush1.msra.mxu0 0.0
    %1523 = vmatprep.subr.mxu0 0.0
    %1524 = vmatpush1.msra.mxu0 0.0
    %1525 = vmatprep.subr.mxu0 0.0
    %1526 = vmatpush1.msra.mxu0 0.0
    %1527 = vmatprep.subr.mxu0 0.0
    %1528 = vmatpush1.msra.mxu0 0.0
    %1529 = vmatprep.subr.mxu0 0.0
    %1530 = vmatpush1.msra.mxu0 0.0
    %1531 = vmatprep.subr.mxu0 0.0
    %1532 = vmatpush1.msra.mxu0 0.0
    %1533 = vmatprep.subr.mxu0 0.0
    %1534 = vmatpush1.msra.mxu0 0.0
    %1535 = vmatprep.subr.mxu0 0.0
    %1536 = vmatpush1.msra.mxu0 0.0
    %1537 = vmatprep.subr.mxu0 0.0
    %1538 = vmatpush1.msra.mxu0 0.0
    %1539 = vmatprep.subr.mxu0 0.0
    %1540 = vmatpush1.msra.mxu0 0.0
    %1541 = vmatprep.subr.mxu0 0.0
    %1542 = vmatpush1.msra.mxu0 0.0
    %1543 = vmatprep.subr.mxu0 0.0
    %1544 = vmatpush1.msra.mxu0 0.0
    %1545 = vmatprep.subr.mxu0 0.0
    %1546 = vmatpush1.msra.mxu0 0.0
    %1547 = vmatprep.subr.mxu0 0.0
    %1548 = vmatpush1.msra.mxu0 0.0
    %1549 = vmatprep.subr.mxu0 0.0
    %1550 = vmatpush1.msra.mxu0 0.0
    %1551 = vmatprep.subr.mxu0 0.0
    %1552 = vmatpush1.msra.mxu0 0.0
    %1553 = vmatprep.subr.mxu0 0.0
    %1554 = vmatpush1.msra.mxu0 0.0
    %1555 = vmatprep.mubr.f32.mxu0 0.0
    %1556 = vmatmul.mubr.f32.gmra.mrb[0].mxu0 %v1489
    %v1557 = vpop.f32.mrb[0].mxu0
    %v1558 = vadd.f32 %v1486, %v1557
    %v1559 = vpop.f32.mrb[0].mxu0
    %1560 = vdwg.mxu0
    %1561 = vst [vmem:[#allocation2] sm:$0xff] %v1558
    // Predicated region
    $region38: #{tpu_custom_call.1} parent=1 // pred_check
      _
    $region39: #{tpu_custom_call.1} parent=1 // pred_check_branch
      %1563 = sbr.rel (0) target = $region41
    $region40: #{tpu_custom_call.1} parent=1 // pred_region
      %s1565 = ssub.s32 128, 128
      %1566 = vsyncadd [#allocation3], %s1565
      %s1568 = sshll.u32 [#allocation2], 4
      %s1569 = int_to_ptr.vmem [resolvable:$true] %s1568
      %1571 = dma.vmem_to_hbm [thread:$0]  %s1569, 128, %s9, [#allocation3]
    $region41: #{tpu_custom_call.1} parent=1 // pred_fallthru
      _
    // Predicated region
    $region42: #{tpu_custom_call.1} parent=1 // pred_check
      _
    $region43: #{tpu_custom_call.1} parent=1 // pred_check_branch
      %1573 = sbr.rel (0) target = $region45
    $region44: #{tpu_custom_call.1} parent=1 // pred_region
      %1574 = dma.done [#allocation3], 128
    $region45: #{tpu_custom_call.1} parent=1 // pred_fallthru
      _
    %1575 = vsyncpa [#allocation3], 1

</llo_original>
